<compile_context>
chip_gen: v6e
topology: v6e:2x2x1
jax: 0.10.0
libtpu: 0.0.40
codegen_flags: <defaults>
</compile_context>

<pallas_src>
import functools

import jax
import jax.numpy as jnp
from jax.experimental import pallas as pl
from jax.experimental.pallas import tpu as pltpu


def _round_up(x, m):
    return ((x + m - 1) // m) * m


def mlp_kernel(x_ref,
               w1_ref, b1_ref,
               w2_ref, b2_ref,
               w3_ref, b3_ref,
               w4_ref, b4_ref,
               o_ref,
               h_ref):
    """grid = (m_tiles, n_tiles).  Hidden stack runs once per batch tile
    (at n == 0) into bf16 scratch; each n step does one vocab-tile matmul."""

    @pl.when(pl.program_id(1) == 0)
    def _():
        h = jnp.dot(x_ref[...], w1_ref[...], preferred_element_type=jnp.float32)
        h = jnp.maximum(h + b1_ref[...], 0.0)
        h = jnp.dot(h.astype(jnp.bfloat16), w2_ref[...],
                    preferred_element_type=jnp.float32)
        h = jnp.maximum(h + b2_ref[...], 0.0)
        h = jnp.dot(h.astype(jnp.bfloat16), w3_ref[...],
                    preferred_element_type=jnp.float32)
        h = jnp.maximum(h + b3_ref[...], 0.0)
        h_ref[...] = h.astype(jnp.bfloat16)

    out = jnp.dot(h_ref[...], w4_ref[...], preferred_element_type=jnp.float32)
    o_ref[...] = (out + b4_ref[...]).astype(o_ref.dtype)


@functools.partial(jax.jit, static_argnames=("block_m", "block_n"))
def mlp_forward(x, params, block_m=128, block_n=2048):
    """x: (B, contextSize*embeddingDim) float32.  params: dict of W/b arrays
    with W stored as (in_features, out_features) and b as (1, out_features)."""
    assert block_m % 8 == 0 and block_n % 128 == 0
    B, d_in = x.shape
    w1, b1 = params["w1"], params["b1"]
    w2, b2 = params["w2"], params["b2"]
    w3, b3 = params["w3"], params["b3"]
    w4, b4 = params["w4"], params["b4"]
    hidden = w1.shape[1]
    vocab = w4.shape[1]

    # Tile sizes (clamped for tiny test shapes; all static).
    bm = min(block_m, _round_up(B, 8))
    bn = min(block_n, _round_up(vocab, 128))

    # Pad to tile-friendly shapes (zero padding keeps the math exact).
    d_in_p = _round_up(d_in, 128)
    B_p = _round_up(B, bm)
    vocab_p = _round_up(vocab, bn)

    bf16 = jnp.bfloat16
    x_p = jnp.pad(x, ((0, B_p - B), (0, d_in_p - d_in))).astype(bf16)
    w1_p = jnp.pad(w1, ((0, d_in_p - d_in), (0, 0))).astype(bf16)
    w2_c = w2.astype(bf16)
    w3_c = w3.astype(bf16)
    w4_p = jnp.pad(w4, ((0, 0), (0, vocab_p - vocab))).astype(bf16)
    b1_c = b1.astype(jnp.float32)
    b2_c = b2.astype(jnp.float32)
    b3_c = b3.astype(jnp.float32)
    b4_p = jnp.pad(b4, ((0, 0), (0, vocab_p - vocab))).astype(jnp.float32)

    grid = (B_p // bm, vocab_p // bn)

    # Constant-index (fully resident) operands.  (Single-buffering them via
    # pl.Buffered(1) would halve their VMEM, but at ~1 MB of resident weights
    # for layers 1-3 it is not worth the compile risk here.)
    const = lambda shape: pl.BlockSpec(shape, lambda m, n: (0, 0))

    out_p = pl.pallas_call(
        mlp_kernel,
        out_shape=jax.ShapeDtypeStruct((B_p, vocab_p), jnp.float32),
        grid_spec=pltpu.PrefetchScalarGridSpec(
            num_scalar_prefetch=0,
            grid=grid,
            in_specs=[
                pl.BlockSpec((bm, d_in_p), lambda m, n: (m, 0)),   # x tile
                const((d_in_p, hidden)), const((1, hidden)),       # layer 1
                const((hidden, hidden)), const((1, hidden)),       # layer 2
                const((hidden, hidden)), const((1, hidden)),       # layer 3
                pl.BlockSpec((hidden, bn), lambda m, n: (0, n)),   # w4 vocab tile
                pl.BlockSpec((1, bn), lambda m, n: (0, n)),        # b4 vocab tile
            ],
            out_specs=pl.BlockSpec((bm, bn), lambda m, n: (m, n)),
            scratch_shapes=[pltpu.VMEM((bm, hidden), jnp.bfloat16)],
        ),
        compiler_params=pltpu.CompilerParams(
            dimension_semantics=("parallel", "arbitrary"),
            vmem_limit_bytes=48 * 1024 * 1024,
        ),
    )(x_p, w1_p, b1_c, w2_c, b2_c, w3_c, b3_c, w4_p, b4_p)

    return out_p[:B, :vocab]


def init_linear(key, fan_in, fan_out):
    """PyTorch nn.Linear-style uniform init; weight stored as (in, out)."""
    kw, kb = jax.random.split(key)
    bound = 1.0 / jnp.sqrt(float(fan_in))
    w = jax.random.uniform(kw, (fan_in, fan_out), jnp.float32, -bound, bound)
    b = jax.random.uniform(kb, (1, fan_out), jnp.float32, -bound, bound)
    return w, b


def reference_forward(x, params):
    """Pure-JAX reference matching the kernel's numerics:
    bf16 operands, f32 accumulation, f32 bias add / ReLU, bf16 hidden carry."""
    bf = jnp.bfloat16
    f32 = jnp.float32
    h = jnp.dot(x.astype(bf), params["w1"].astype(bf), preferred_element_type=f32)
    h = jnp.maximum(h + params["b1"], 0.0)
    h = jnp.dot(h.astype(bf), params["w2"].astype(bf), preferred_element_type=f32)
    h = jnp.maximum(h + params["b2"], 0.0)
    h = jnp.dot(h.astype(bf), params["w3"].astype(bf), preferred_element_type=f32)
    h = jnp.maximum(h + params["b3"], 0.0)
    return (jnp.dot(h.astype(bf), params["w4"].astype(bf),
                    preferred_element_type=f32) + params["b4"])


if __name__ == "__main__":
    # Small, module-consistent stand-in shapes.
    # TODO(synk): the gensim/word2vec + wordfreq vocab construction is host-side
    # data prep, not part of the forward pass; real sizes are embeddingDim=300
    # and vocabSize=len(filteredWords).
    contextSize = 15
    embeddingDim = 20          # stand-in for word2vec's 300
    vocabSize = 512            # stand-in for the filtered vocab
    hidden = 256
    batch = 200                # not a multiple of 128 -> exercises batch padding

    key = jax.random.PRNGKey(0)
    kx, k1, k2, k3, k4 = jax.random.split(key, 5)

    d_in = contextSize * embeddingDim
    x = jax.random.normal(kx, (batch, d_in), jnp.float32)

    w1, b1 = init_linear(k1, d_in, hidden)
    w2, b2 = init_linear(k2, hidden, hidden)
    w3, b3 = init_linear(k3, hidden, hidden)
    w4, b4 = init_linear(k4, hidden, vocabSize)
    params = {"w1": w1, "b1": b1, "w2": w2, "b2": b2,
              "w3": w3, "b3": b3, "w4": w4, "b4": b4}

    # block_n=256 exercises the vocab-tiled (n) axis with scratch reuse.
    out = mlp_forward(x, params, block_m=128, block_n=256)
    out = jax.block_until_ready(out)

    ref = reference_forward(x, params)
    assert out.shape == (batch, vocabSize)
    assert jnp.allclose(out, ref, atol=2e-3, rtol=2e-3), (
        float(jnp.max(jnp.abs(out - ref))))

    print("KERNEL_OK")
</pallas_src>

<mosaic_0001>
module attributes {stable_mosaic.version = 11 : i64} {
  func.func @mlp_kernel(%arg0: i32, %arg1: i32, %arg2: memref<128x384xbf16, #tpu.memory_space<vmem>>, %arg3: memref<384x256xbf16, #tpu.memory_space<vmem>>, %arg4: memref<1x256xf32, #tpu.memory_space<vmem>>, %arg5: memref<256x256xbf16, #tpu.memory_space<vmem>>, %arg6: memref<1x256xf32, #tpu.memory_space<vmem>>, %arg7: memref<256x256xbf16, #tpu.memory_space<vmem>>, %arg8: memref<1x256xf32, #tpu.memory_space<vmem>>, %arg9: memref<256x256xbf16, #tpu.memory_space<vmem>>, %arg10: memref<1x256xf32, #tpu.memory_space<vmem>>, %arg11: memref<128x256xf32, #tpu.memory_space<vmem>>, %arg12: memref<128x256xbf16, #tpu.memory_space<vmem>>) attributes {dimension_semantics = [#tpu.dimension_semantics<parallel>, #tpu.dimension_semantics<arbitrary>], iteration_bounds = array<i64: 2, 2>, scalar_prefetch = 0 : i64, scratch_operands = 1 : i64, tpu.core_type = #tpu.core_type<tc>, window_params = [{transform_indices = @transform_0, window_bounds = array<i64: 128, 384>}, {pipeline_mode = #tpu.pipeline_mode<synchronous>, transform_indices = @transform_1, window_bounds = array<i64: 384, 256>}, {pipeline_mode = #tpu.pipeline_mode<synchronous>, transform_indices = @transform_2, window_bounds = array<i64: 1, 256>}, {pipeline_mode = #tpu.pipeline_mode<synchronous>, transform_indices = @transform_3, window_bounds = array<i64: 256, 256>}, {pipeline_mode = #tpu.pipeline_mode<synchronous>, transform_indices = @transform_4, window_bounds = array<i64: 1, 256>}, {pipeline_mode = #tpu.pipeline_mode<synchronous>, transform_indices = @transform_5, window_bounds = array<i64: 256, 256>}, {pipeline_mode = #tpu.pipeline_mode<synchronous>, transform_indices = @transform_6, window_bounds = array<i64: 1, 256>}, {transform_indices = @transform_7, window_bounds = array<i64: 256, 256>}, {transform_indices = @transform_8, window_bounds = array<i64: 1, 256>}, {transform_indices = @transform_9, window_bounds = array<i64: 128, 256>}]} {
    %c0_i32 = arith.constant 0 : i32
    %0 = arith.cmpi eq, %arg1, %c0_i32 : i32
    %1 = arith.extui %0 : i1 to i32
    %c0_i32_0 = arith.constant 0 : i32
    %2 = arith.cmpi ne, %1, %c0_i32_0 : i32
    scf.if %2 {
      %c0_8 = arith.constant 0 : index
      %c0_9 = arith.constant 0 : index
      %10 = vector.load %arg2[%c0_8, %c0_9] : memref<128x384xbf16, #tpu.memory_space<vmem>>, vector<128x384xbf16>
      %c0_10 = arith.constant 0 : index
      %c0_11 = arith.constant 0 : index
      %11 = vector.load %arg3[%c0_10, %c0_11] : memref<384x256xbf16, #tpu.memory_space<vmem>>, vector<384x256xbf16>
      %cst_12 = arith.constant dense<0.000000e+00> : vector<128x256xf32>
      %12 = tpu.matmul %10, %11, %cst_12 {dimension_numbers = #tpu.dot_dimension_numbers<[1], [0], [0], [1], [0, 0, 1, 1], [], []>} : vector<128x384xbf16>, vector<384x256xbf16>, vector<128x256xf32> -> vector<128x256xf32>
      %c0_13 = arith.constant 0 : index
      %c0_14 = arith.constant 0 : index
      %13 = vector.load %arg4[%c0_13, %c0_14] : memref<1x256xf32, #tpu.memory_space<vmem>>, vector<1x256xf32>
      %14 = vector.broadcast %13 : vector<1x256xf32> to vector<128x256xf32>
      %15 = arith.addf %12, %14 : vector<128x256xf32>
      %cst_15 = arith.constant 0.000000e+00 : f32
      %16 = vector.broadcast %cst_15 : f32 to vector<128x256xf32>
      %17 = arith.maximumf %15, %16 : vector<128x256xf32>
      %18 = arith.truncf %17 : vector<128x256xf32> to vector<128x256xbf16>
      %c0_16 = arith.constant 0 : index
      %c0_17 = arith.constant 0 : index
      %19 = vector.load %arg5[%c0_16, %c0_17] : memref<256x256xbf16, #tpu.memory_space<vmem>>, vector<256x256xbf16>
      %cst_18 = arith.constant dense<0.000000e+00> : vector<128x256xf32>
      %20 = tpu.matmul %18, %19, %cst_18 {dimension_numbers = #tpu.dot_dimension_numbers<[1], [0], [0], [1], [0, 0, 1, 1], [], []>} : vector<128x256xbf16>, vector<256x256xbf16>, vector<128x256xf32> -> vector<128x256xf32>
      %c0_19 = arith.constant 0 : index
      %c0_20 = arith.constant 0 : index
      %21 = vector.load %arg6[%c0_19, %c0_20] : memref<1x256xf32, #tpu.memory_space<vmem>>, vector<1x256xf32>
      %22 = vector.broadcast %21 : vector<1x256xf32> to vector<128x256xf32>
      %23 = arith.addf %20, %22 : vector<128x256xf32>
      %cst_21 = arith.constant 0.000000e+00 : f32
      %24 = vector.broadcast %cst_21 : f32 to vector<128x256xf32>
      %25 = arith.maximumf %23, %24 : vector<128x256xf32>
      %26 = arith.truncf %25 : vector<128x256xf32> to vector<128x256xbf16>
      %c0_22 = arith.constant 0 : index
      %c0_23 = arith.constant 0 : index
      %27 = vector.load %arg7[%c0_22, %c0_23] : memref<256x256xbf16, #tpu.memory_space<vmem>>, vector<256x256xbf16>
      %cst_24 = arith.constant dense<0.000000e+00> : vector<128x256xf32>
      %28 = tpu.matmul %26, %27, %cst_24 {dimension_numbers = #tpu.dot_dimension_numbers<[1], [0], [0], [1], [0, 0, 1, 1], [], []>} : vector<128x256xbf16>, vector<256x256xbf16>, vector<128x256xf32> -> vector<128x256xf32>
      %c0_25 = arith.constant 0 : index
      %c0_26 = arith.constant 0 : index
      %29 = vector.load %arg8[%c0_25, %c0_26] : memref<1x256xf32, #tpu.memory_space<vmem>>, vector<1x256xf32>
      %30 = vector.broadcast %29 : vector<1x256xf32> to vector<128x256xf32>
      %31 = arith.addf %28, %30 : vector<128x256xf32>
      %cst_27 = arith.constant 0.000000e+00 : f32
      %32 = vector.broadcast %cst_27 : f32 to vector<128x256xf32>
      %33 = arith.maximumf %31, %32 : vector<128x256xf32>
      %34 = arith.truncf %33 : vector<128x256xf32> to vector<128x256xbf16>
      %c0_28 = arith.constant 0 : index
      %c0_29 = arith.constant 0 : index
      %35 = vector.load %arg12[%c0_28, %c0_29] : memref<128x256xbf16, #tpu.memory_space<vmem>>, vector<128x256xbf16>
      tpu.vector_store %arg12[%c0_28, %c0_29], %34 {strides = array<i32>} : memref<128x256xbf16, #tpu.memory_space<vmem>>, vector<128x256xbf16>,
    } else {
    }
    %c0 = arith.constant 0 : index
    %c0_1 = arith.constant 0 : index
    %3 = vector.load %arg12[%c0, %c0_1] : memref<128x256xbf16, #tpu.memory_space<vmem>>, vector<128x256xbf16>
    %c0_2 = arith.constant 0 : index
    %c0_3 = arith.constant 0 : index
    %4 = vector.load %arg9[%c0_2, %c0_3] : memref<256x256xbf16, #tpu.memory_space<vmem>>, vector<256x256xbf16>
    %cst = arith.constant dense<0.000000e+00> : vector<128x256xf32>
    %5 = tpu.matmul %3, %4, %cst {dimension_numbers = #tpu.dot_dimension_numbers<[1], [0], [0], [1], [0, 0, 1, 1], [], []>} : vector<128x256xbf16>, vector<256x256xbf16>, vector<128x256xf32> -> vector<128x256xf32>
    %c0_4 = arith.constant 0 : index
    %c0_5 = arith.constant 0 : index
    %6 = vector.load %arg10[%c0_4, %c0_5] : memref<1x256xf32, #tpu.memory_space<vmem>>, vector<1x256xf32>
    %7 = vector.broadcast %6 : vector<1x256xf32> to vector<128x256xf32>
    %8 = arith.addf %5, %7 : vector<128x256xf32>
    %c0_6 = arith.constant 0 : index
    %c0_7 = arith.constant 0 : index
    %9 = vector.load %arg11[%c0_6, %c0_7] : memref<128x256xf32, #tpu.memory_space<vmem>>, vector<128x256xf32>
    tpu.vector_store %arg11[%c0_6, %c0_7], %8 {strides = array<i32>} : memref<128x256xf32, #tpu.memory_space<vmem>>, vector<128x256xf32>,
    return
  }
  func.func @transform_0(%arg0: i32, %arg1: i32) -> (i32, i32) {
    %c0_i32 = arith.constant 0 : i32
    %c0_i32_0 = arith.constant 0 : i32
    return %arg0, %c0_i32 : i32, i32
  }
  func.func @transform_1(%arg0: i32, %arg1: i32) -> (i32, i32) {
    %c0_i32 = arith.constant 0 : i32
    %c0_i32_0 = arith.constant 0 : i32
    %c0_i32_1 = arith.constant 0 : i32
    return %c0_i32, %c0_i32_0 : i32, i32
  }
  func.func @transform_2(%arg0: i32, %arg1: i32) -> (i32, i32) {
    %c0_i32 = arith.constant 0 : i32
    %c0_i32_0 = arith.constant 0 : i32
    %c0_i32_1 = arith.constant 0 : i32
    return %c0_i32, %c0_i32_0 : i32, i32
  }
  func.func @transform_3(%arg0: i32, %arg1: i32) -> (i32, i32) {
    %c0_i32 = arith.constant 0 : i32
    %c0_i32_0 = arith.constant 0 : i32
    %c0_i32_1 = arith.constant 0 : i32
    return %c0_i32, %c0_i32_0 : i32, i32
  }
  func.func @transform_4(%arg0: i32, %arg1: i32) -> (i32, i32) {
    %c0_i32 = arith.constant 0 : i32
    %c0_i32_0 = arith.constant 0 : i32
    %c0_i32_1 = arith.constant 0 : i32
    return %c0_i32, %c0_i32_0 : i32, i32
  }
  func.func @transform_5(%arg0: i32, %arg1: i32) -> (i32, i32) {
    %c0_i32 = arith.constant 0 : i32
    %c0_i32_0 = arith.constant 0 : i32
    %c0_i32_1 = arith.constant 0 : i32
    return %c0_i32, %c0_i32_0 : i32, i32
  }
  func.func @transform_6(%arg0: i32, %arg1: i32) -> (i32, i32) {
    %c0_i32 = arith.constant 0 : i32
    %c0_i32_0 = arith.constant 0 : i32
    %c0_i32_1 = arith.constant 0 : i32
    return %c0_i32, %c0_i32_0 : i32, i32
  }
  func.func @transform_7(%arg0: i32, %arg1: i32) -> (i32, i32) {
    %c0_i32 = arith.constant 0 : i32
    %c0_i32_0 = arith.constant 0 : i32
    return %c0_i32, %arg1 : i32, i32
  }
  func.func @transform_8(%arg0: i32, %arg1: i32) -> (i32, i32) {
    %c0_i32 = arith.constant 0 : i32
    %c0_i32_0 = arith.constant 0 : i32
    return %c0_i32, %arg1 : i32, i32
  }
  func.func @transform_9(%arg0: i32, %arg1: i32) -> (i32, i32) {
    %c0_i32 = arith.constant 0 : i32
    return %arg0, %arg1 : i32, i32
  }
}

</mosaic_0001>

<llo_original>
// kernel: mlp_forward.1
$region0: #{mlp_forward.1}
  #allocation0 [shape = 'u32[]', space=smem, size = 0x4, offset = 0x4, fixed_abs, tag = 'smem constant byte address 0x4 - core index']
  #allocation1 [shape = 'u32[144,128]{1,0:T(1,128)}', space=vmem, size = 0x12000, scoped, tag = 'internal scratch']
  #allocation2 [shape = 'bf16[128,256]{1,0:T(8,128)(2,1)}', space=vmem, size = 0x10000, scoped, tag = 'scratch operand']
  %s0 = inlined_call_operand.vmem [shape: bf16[256,384], index: 0, kind: input, shape index: {}]
  %s1 = inlined_call_operand.vmem [shape: bf16[384,256], index: 1, kind: input, shape index: {}]
  %s2 = inlined_call_operand.vmem [shape: f32[1,256], index: 2, kind: input, shape index: {}]
  %s3 = inlined_call_operand.vmem [shape: bf16[256,256], index: 3, kind: input, shape index: {}]
  %s4 = inlined_call_operand.vmem [shape: f32[1,256], index: 4, kind: input, shape index: {}]
  %s5 = inlined_call_operand.vmem [shape: bf16[256,256], index: 5, kind: input, shape index: {}]
  %s6 = inlined_call_operand.vmem [shape: f32[1,256], index: 6, kind: input, shape index: {}]
  %s7 = inlined_call_operand.vmem [shape: bf16[256,512], index: 7, kind: input, shape index: {}]
  %s8 = inlined_call_operand.vmem [shape: f32[1,512], index: 8, kind: input, shape index: {}]
  %s9 = inlined_call_operand.vmem [shape: f32[256,512], index: 9, kind: output, shape index: {}]
  %s10 = sld [smem:[#allocation0]]
  $region130: #{mlp_forward.1} parent=0
    _
  %s12 = ssub.s32 1, %s10
  %s13 = scalar_select 0, %s12, %s10
  $region1: #{mlp_forward.1} parent=0
    #allocation3 [shape = 'u8[262144]{0}', space=vmem, size = 0x40000, scoped, tag = 'input window, operand 7']
    #allocation4 [shape = 'u8[262144]{0}', space=vmem, size = 0x40000, scoped, tag = 'output window, operand 0']
    loop: start=0, step=1, limit=6
    $region2: #{mlp_forward.1} parent=1 // loop_pre_header
      _
    $region3: #{mlp_forward.1} parent=1 // loop_header
      %s15 = sphi 0, %s19
      %p16 = scmp.ge.s32.totalorder %s15, 6
      %s22 = sphi 0, %s34
      %s23 = sphi 0, %s30
      %s24 = sphi 0, %s22
      %s25 = sphi 0, %s23
      %s26 = sphi 0, %s24
      %s27 = sphi 0, %s25
      %s37 = sphi 0, %s39
      %s40 = sphi 0, %s37
      %s41 = sphi 0, %s40
      %s57 = sphi 0, %s41
      %s61 = sphi 0, %s61
      %s63 = sphi 0, %s61
      %s64 = sphi 0, %s63
      %s78 = sphi 0, %s64
      %s82 = sphi 0, %s82
      %s84 = sphi 0, %s82
      %s85 = sphi 0, %s84
      %s99 = sphi 0, %s85
      %s103 = sphi 0, %s103
      %s105 = sphi 0, %s103
      %s106 = sphi 0, %s105
      %s120 = sphi 0, %s106
      %s124 = sphi 0, %s124
      %s126 = sphi 0, %s124
      %s127 = sphi 0, %s126
      %s141 = sphi 0, %s127
      %s145 = sphi 0, %s145
      %s147 = sphi 0, %s145
      %s148 = sphi 0, %s147
      %s162 = sphi 0, %s148
      %s166 = sphi 0, %s166
      %s168 = sphi 0, %s166
      %s169 = sphi 0, %s168
      %s183 = sphi 0, %s169
      %s189 = sphi 0, %s191
      %s192 = sphi 0, %s189
      %s193 = sphi 0, %s192
      %s209 = sphi 0, %s193
      %s215 = sphi 0, %s217
      %s218 = sphi 0, %s215
      %s219 = sphi 0, %s218
      %s235 = sphi 0, %s219
      %s243 = sphi 0, %s245
      %s246 = sphi 0, %s243
      %s247 = sphi 0, %s246
      %s263 = sphi 0, %s247
    $region4: #{mlp_forward.1} parent=1 // loop_header_branch
      %18 = sbr.rel (%p16) target = $region8
    $region5: #{mlp_forward.1} parent=1 // loop_body
      %s20 = ssub.s32 %s15, 1
      %s21 = ssub.s32 %s15, 2
      %s28 = sadd.s32 1, %s23
      %p29 = scmp.ge.s32.totalorder %s28, 2
      %s30 = scalar_select %p29, 0, %s28
      %s31 = sadd.s32 1, %s22
      %s32 = scalar_select %p29, %s31, %s22
      %p33 = scmp.ge.s32.totalorder %s32, 2
      %s34 = scalar_select %p33, 0, %s32
      %s35 = ssub.s32 %s22, %s34
      %p36 = scmp.eq.s32.totalorder %s35, 0
      %s38 = sadd.s32 %s37, 1
      %s39 = scalar_select %p36, %s37, %s38
      %p42 = pneg %p36
      %p43 = scmp.eq.s32.totalorder %s15, 3
      %p44 = por %p42, %p43
      %p45 = scmp.ne.s32.totalorder %s37, %s40
      %p46 = scmp.eq.s32.totalorder %s15, 0
      %p47 = por %p45, %p46
      %p48 = scmp.ne.s32.totalorder %s37, %s40
      %p49 = scmp.eq.s32.totalorder %s20, 3
      %p50 = por %p48, %p49
      %p51 = scmp.ne.s32.totalorder %s40, %s41
      %p52 = scmp.eq.s32.totalorder %s20, 0
      %p53 = por %p51, %p52
      %p54 = scmp.ne.s32.totalorder %s40, %s41
      %p55 = scmp.eq.s32.totalorder %s21, 3
      %p56 = por %p54, %p55
      %p58 = scmp.ne.s32.totalorder %s41, %s57
      %p59 = scmp.eq.s32.totalorder %s21, 0
      %p60 = por %p58, %p59
      %s62 = sadd.s32 %s61, 1
      %p65 = scmp.eq.s32.totalorder %s15, 3
      %p66 = scmp.ne.s32.totalorder %s61, %s63
      %p67 = scmp.eq.s32.totalorder %s15, 0
      %p68 = por %p66, %p67
      %p69 = scmp.ne.s32.totalorder %s61, %s63
      %p70 = scmp.eq.s32.totalorder %s20, 3
      %p71 = por %p69, %p70
      %p72 = scmp.ne.s32.totalorder %s63, %s64
      %p73 = scmp.eq.s32.totalorder %s20, 0
      %p74 = por %p72, %p73
      %p75 = scmp.ne.s32.totalorder %s63, %s64
      %p76 = scmp.eq.s32.totalorder %s21, 3
      %p77 = por %p75, %p76
      %p79 = scmp.ne.s32.totalorder %s64, %s78
      %p80 = scmp.eq.s32.totalorder %s21, 0
      %p81 = por %p79, %p80
      %s83 = sadd.s32 %s82, 1
      %p86 = scmp.eq.s32.totalorder %s15, 3
      %p87 = scmp.ne.s32.totalorder %s82, %s84
      %p88 = scmp.eq.s32.totalorder %s15, 0
      %p89 = por %p87, %p88
      %p90 = scmp.ne.s32.totalorder %s82, %s84
      %p91 = scmp.eq.s32.totalorder %s20, 3
      %p92 = por %p90, %p91
      %p93 = scmp.ne.s32.totalorder %s84, %s85
      %p94 = scmp.eq.s32.totalorder %s20, 0
      %p95 = por %p93, %p94
      %p96 = scmp.ne.s32.totalorder %s84, %s85
      %p97 = scmp.eq.s32.totalorder %s21, 3
      %p98 = por %p96, %p97
      %p100 = scmp.ne.s32.totalorder %s85, %s99
      %p101 = scmp.eq.s32.totalorder %s21, 0
      %p102 = por %p100, %p101
      %s104 = sadd.s32 %s103, 1
      %p107 = scmp.eq.s32.totalorder %s15, 3
      %p108 = scmp.ne.s32.totalorder %s103, %s105
      %p109 = scmp.eq.s32.totalorder %s15, 0
      %p110 = por %p108, %p109
      %p111 = scmp.ne.s32.totalorder %s103, %s105
      %p112 = scmp.eq.s32.totalorder %s20, 3
      %p113 = por %p111, %p112
      %p114 = scmp.ne.s32.totalorder %s105, %s106
      %p115 = scmp.eq.s32.totalorder %s20, 0
      %p116 = por %p114, %p115
      %p117 = scmp.ne.s32.totalorder %s105, %s106
      %p118 = scmp.eq.s32.totalorder %s21, 3
      %p119 = por %p117, %p118
      %p121 = scmp.ne.s32.totalorder %s106, %s120
      %p122 = scmp.eq.s32.totalorder %s21, 0
      %p123 = por %p121, %p122
      %s125 = sadd.s32 %s124, 1
      %p128 = scmp.eq.s32.totalorder %s15, 3
      %p129 = scmp.ne.s32.totalorder %s124, %s126
      %p130 = scmp.eq.s32.totalorder %s15, 0
      %p131 = por %p129, %p130
      %p132 = scmp.ne.s32.totalorder %s124, %s126
      %p133 = scmp.eq.s32.totalorder %s20, 3
      %p134 = por %p132, %p133
      %p135 = scmp.ne.s32.totalorder %s126, %s127
      %p136 = scmp.eq.s32.totalorder %s20, 0
      %p137 = por %p135, %p136
      %p138 = scmp.ne.s32.totalorder %s126, %s127
      %p139 = scmp.eq.s32.totalorder %s21, 3
      %p140 = por %p138, %p139
      %p142 = scmp.ne.s32.totalorder %s127, %s141
      %p143 = scmp.eq.s32.totalorder %s21, 0
      %p144 = por %p142, %p143
      %s146 = sadd.s32 %s145, 1
      %p149 = scmp.eq.s32.totalorder %s15, 3
      %p150 = scmp.ne.s32.totalorder %s145, %s147
      %p151 = scmp.eq.s32.totalorder %s15, 0
      %p152 = por %p150, %p151
      %p153 = scmp.ne.s32.totalorder %s145, %s147
      %p154 = scmp.eq.s32.totalorder %s20, 3
      %p155 = por %p153, %p154
      %p156 = scmp.ne.s32.totalorder %s147, %s148
      %p157 = scmp.eq.s32.totalorder %s20, 0
      %p158 = por %p156, %p157
      %p159 = scmp.ne.s32.totalorder %s147, %s148
      %p160 = scmp.eq.s32.totalorder %s21, 3
      %p161 = por %p159, %p160
      %p163 = scmp.ne.s32.totalorder %s148, %s162
      %p164 = scmp.eq.s32.totalorder %s21, 0
      %p165 = por %p163, %p164
      %s167 = sadd.s32 %s166, 1
      %p170 = scmp.eq.s32.totalorder %s15, 3
      %p171 = scmp.ne.s32.totalorder %s166, %s168
      %p172 = scmp.eq.s32.totalorder %s15, 0
      %p173 = por %p171, %p172
      %p174 = scmp.ne.s32.totalorder %s166, %s168
      %p175 = scmp.eq.s32.totalorder %s20, 3
      %p176 = por %p174, %p175
      %p177 = scmp.ne.s32.totalorder %s168, %s169
      %p178 = scmp.eq.s32.totalorder %s20, 0
      %p179 = por %p177, %p178
      %p180 = scmp.ne.s32.totalorder %s168, %s169
      %p181 = scmp.eq.s32.totalorder %s21, 3
      %p182 = por %p180, %p181
      %p184 = scmp.ne.s32.totalorder %s169, %s183
      %p185 = scmp.eq.s32.totalorder %s21, 0
      %p186 = por %p184, %p185
      %s187 = ssub.s32 %s23, %s30
      %p188 = scmp.eq.s32.totalorder %s187, 0
      %s190 = sadd.s32 %s189, 1
      %s191 = scalar_select %p188, %s189, %s190
      %p194 = pneg %p188
      %p195 = scmp.eq.s32.totalorder %s15, 3
      %p196 = por %p194, %p195
      %p197 = scmp.ne.s32.totalorder %s189, %s192
      %p198 = scmp.eq.s32.totalorder %s15, 0
      %p199 = por %p197, %p198
      %p200 = scmp.ne.s32.totalorder %s189, %s192
      %p201 = scmp.eq.s32.totalorder %s20, 3
      %p202 = por %p200, %p201
      %p203 = scmp.ne.s32.totalorder %s192, %s193
      %p204 = scmp.eq.s32.totalorder %s20, 0
      %p205 = por %p203, %p204
      %p206 = scmp.ne.s32.totalorder %s192, %s193
      %p207 = scmp.eq.s32.totalorder %s21, 3
      %p208 = por %p206, %p207
      %p210 = scmp.ne.s32.totalorder %s193, %s209
      %p211 = scmp.eq.s32.totalorder %s21, 0
      %p212 = por %p210, %p211
      %s213 = ssub.s32 %s23, %s30
      %p214 = scmp.eq.s32.totalorder %s213, 0
      %s216 = sadd.s32 %s215, 1
      %s217 = scalar_select %p214, %s215, %s216
      %p220 = pneg %p214
      %p221 = scmp.eq.s32.totalorder %s15, 3
      %p222 = por %p220, %p221
      %p223 = scmp.ne.s32.totalorder %s215, %s218
      %p224 = scmp.eq.s32.totalorder %s15, 0
      %p225 = por %p223, %p224
      %p226 = scmp.ne.s32.totalorder %s215, %s218
      %p227 = scmp.eq.s32.totalorder %s20, 3
      %p228 = por %p226, %p227
      %p229 = scmp.ne.s32.totalorder %s218, %s219
      %p230 = scmp.eq.s32.totalorder %s20, 0
      %p231 = por %p229, %p230
      %p232 = scmp.ne.s32.totalorder %s218, %s219
      %p233 = scmp.eq.s32.totalorder %s21, 3
      %p234 = por %p232, %p233
      %p236 = scmp.ne.s32.totalorder %s219, %s235
      %p237 = scmp.eq.s32.totalorder %s21, 0
      %p238 = por %p236, %p237
      %s239 = ssub.s32 %s22, %s34
      %s240 = ssub.s32 %s23, %s30
      %s241 = sor.u32 %s239, %s240
      %p242 = scmp.eq.s32.totalorder %s241, 0
      %s244 = sadd.s32 %s243, 1
      %s245 = scalar_select %p242, %s243, %s244
      %p248 = pneg %p242
      %p249 = scmp.eq.s32.totalorder %s15, 3
      %p250 = por %p248, %p249
      %p251 = scmp.ne.s32.totalorder %s243, %s246
      %p252 = scmp.eq.s32.totalorder %s15, 0
      %p253 = por %p251, %p252
      %p254 = scmp.ne.s32.totalorder %s243, %s246
      %p255 = scmp.eq.s32.totalorder %s20, 3
      %p256 = por %p254, %p255
      %p257 = scmp.ne.s32.totalorder %s246, %s247
      %p258 = scmp.eq.s32.totalorder %s20, 0
      %p259 = por %p257, %p258
      %p260 = scmp.ne.s32.totalorder %s246, %s247
      %p261 = scmp.eq.s32.totalorder %s21, 3
      %p262 = por %p260, %p261
      %p264 = scmp.ne.s32.totalorder %s247, %s263
      %p265 = scmp.eq.s32.totalorder %s21, 0
      %p266 = por %p264, %p265
      %p267 = scmp.le.s32.totalorder 1, %s15
      %p268 = scmp.lt.s32.totalorder %s15, 5
      %p269 = pnand %p267, %p268
      %p270 = pneg %p269
      // Predicated region
      $region9: #{mlp_forward.1} parent=5 // pred_check
        _
      $region10: #{mlp_forward.1} parent=5 // pred_check_branch
        %272 = sbr.rel (%p269) target = $region12
      $region11: #{mlp_forward.1} parent=5 // pred_region
        %s273 = ssub.s32 %s15, 1
        // Predicated region
        $region13: #{mlp_forward.1} parent=11 // pred_check
          %p274 = pneg %p74
        $region14: #{mlp_forward.1} parent=11 // pred_check_branch
          %276 = sbr.rel (%p274) target = $region16
        $region15: #{mlp_forward.1} parent=11 // pred_region
          _
        $region16: #{mlp_forward.1} parent=11 // pred_fallthru
          _
        // Predicated region
        $region17: #{mlp_forward.1} parent=11 // pred_check
          %p277 = pneg %p95
        $region18: #{mlp_forward.1} parent=11 // pred_check_branch
          %279 = sbr.rel (%p277) target = $region20
        $region19: #{mlp_forward.1} parent=11 // pred_region
          _
        $region20: #{mlp_forward.1} parent=11 // pred_fallthru
          _
        // Predicated region
        $region21: #{mlp_forward.1} parent=11 // pred_check
          %p280 = pneg %p116
        $region22: #{mlp_forward.1} parent=11 // pred_check_branch
          %282 = sbr.rel (%p280) target = $region24
        $region23: #{mlp_forward.1} parent=11 // pred_region
          _
        $region24: #{mlp_forward.1} parent=11 // pred_fallthru
          _
        // Predicated region
        $region25: #{mlp_forward.1} parent=11 // pred_check
          %p283 = pneg %p137
        $region26: #{mlp_forward.1} parent=11 // pred_check_branch
          %285 = sbr.rel (%p283) target = $region28
        $region27: #{mlp_forward.1} parent=11 // pred_region
          _
        $region28: #{mlp_forward.1} parent=11 // pred_fallthru
          _
        // Predicated region
        $region29: #{mlp_forward.1} parent=11 // pred_check
          %p286 = pneg %p158
        $region30: #{mlp_forward.1} parent=11 // pred_check_branch
          %288 = sbr.rel (%p286) target = $region32
        $region31: #{mlp_forward.1} parent=11 // pred_region
          _
        $region32: #{mlp_forward.1} parent=11 // pred_fallthru
          _
        // Predicated region
        $region33: #{mlp_forward.1} parent=11 // pred_check
          %p289 = pneg %p179
        $region34: #{mlp_forward.1} parent=11 // pred_check_branch
          %291 = sbr.rel (%p289) target = $region36
        $region35: #{mlp_forward.1} parent=11 // pred_region
          _
        $region36: #{mlp_forward.1} parent=11 // pred_fallthru
          _
      $region12: #{mlp_forward.1} parent=5 // pred_fallthru
        _
      %p292 = scmp.lt.s32.totalorder %s15, 4
      // Predicated region
      $region37: #{mlp_forward.1} parent=5 // pred_check
        %p293 = pneg %p292
      $region38: #{mlp_forward.1} parent=5 // pred_check_branch
        %295 = sbr.rel (%p293) target = $region40
      $region39: #{mlp_forward.1} parent=5 // pred_region
        // Predicated region
        $region41: #{mlp_forward.1} parent=39 // pred_check
          %p296 = pneg %p47
        $region42: #{mlp_forward.1} parent=39 // pred_check_branch
          %298 = sbr.rel (%p296) target = $region44
        $region43: #{mlp_forward.1} parent=39 // pred_region
          %s299 = smul.u32 16, %s22
          %p300 = scmp.lt.s32.totalorder %s299, 31
          %s301 = scalar_select %p300, %s299, 31
          %s302 = smul.addr %s301, 3
          %s303 = smul.addr %s302, 4
          %s304 = scalar_lea.vmem %s0, %s303
          %s305 = smul.u32 16, %s22
        $region44: #{mlp_forward.1} parent=39 // pred_fallthru
          _
        // Predicated region
        $region45: #{mlp_forward.1} parent=39 // pred_check
          %p306 = pneg %p199
        $region46: #{mlp_forward.1} parent=39 // pred_check_branch
          %308 = sbr.rel (%p306) target = $region48
        $region47: #{mlp_forward.1} parent=39 // pred_region
          %s309 = sand.u32 %s189, 1
          %s310 = sand.u32 %s189, 1
          %s311 = smul.addr %s310, 256
          %s312 = scalar_lea.vmem [#allocation3], %s311
          %s313 = smul.u32 2, %s23
          %s314 = smul.addr %s313, 4
          %s315 = scalar_lea.vmem %s7, %s314
          // Predicated region
          $region49: #{mlp_forward.1} parent=47 // pred_check
            _
          $region50: #{mlp_forward.1} parent=47 // pred_check_branch
            %317 = sbr.rel (0) target = $region52
          $region51: #{mlp_forward.1} parent=47 // pred_region
            // Predicated region
            $region53: #{mlp_forward.1} parent=51 // pred_check
              _
            $region54: #{mlp_forward.1} parent=51 // pred_check_branch
              %319 = sbr.rel (0) target = $region56
            $region55: #{mlp_forward.1} parent=51 // pred_region
              // Predicated region
              $region68: #{mlp_forward.1} parent=55 // pred_check
                _
              $region69: #{mlp_forward.1} parent=55 // pred_check_branch
                %397 = sbr.rel (0) target = $region71
              $region70: #{mlp_forward.1} parent=55 // pred_region
                loop: start=0, step=1, limit=1
                $region72: #{mlp_forward.1} parent=70 // loop_pre_header
                  _
                $region73: #{mlp_forward.1} parent=70 // loop_header
                  %s399 = sphi 0, %s403
                  %p400 = scmp.ge.s32.totalorder %s399, 1
                  %s404 = sphi %s315, %s315
                  %s405 = sphi %s312, %s312
                $region74: #{mlp_forward.1} parent=70 // loop_header_branch
                  %402 = sbr.rel (%p400) target = $region78
                $region75: #{mlp_forward.1} parent=70 // loop_body
                  %v406 = vld [vmem:[%s404] sm:$0xff]
                  %407 = vst [vmem:[%s405] sm:$0xff] %v406
                  %v408 = vld [vmem:[%s404 + $0x10] sm:$0xff]
                  %409 = vst [vmem:[%s405 + $0x8] sm:$0xff] %v408
                  %v410 = vld [vmem:[%s404 + $0x20] sm:$0xff]
                  %411 = vst [vmem:[%s405 + $0x10] sm:$0xff] %v410
                  %v412 = vld [vmem:[%s404 + $0x30] sm:$0xff]
                  %413 = vst [vmem:[%s405 + $0x18] sm:$0xff] %v412
                  %v414 = vld [vmem:[%s404 + $0x40] sm:$0xff]
                  %415 = vst [vmem:[%s405 + $0x20] sm:$0xff] %v414
                  %v416 = vld [vmem:[%s404 + $0x50] sm:$0xff]
                  %417 = vst [vmem:[%s405 + $0x28] sm:$0xff] %v416
                  %v418 = vld [vmem:[%s404 + $0x60] sm:$0xff]
                  %419 = vst [vmem:[%s405 + $0x30] sm:$0xff] %v418
                  %v420 = vld [vmem:[%s404 + $0x70] sm:$0xff]
                  %421 = vst [vmem:[%s405 + $0x38] sm:$0xff] %v420
                  %v422 = vld [vmem:[%s404 + $0x80] sm:$0xff]
                  %423 = vst [vmem:[%s405 + $0x40] sm:$0xff] %v422
                  %v424 = vld [vmem:[%s404 + $0x90] sm:$0xff]
                  %425 = vst [vmem:[%s405 + $0x48] sm:$0xff] %v424
                  %v426 = vld [vmem:[%s404 + $0xa0] sm:$0xff]
                  %427 = vst [vmem:[%s405 + $0x50] sm:$0xff] %v426
                  %v428 = vld [vmem:[%s404 + $0xb0] sm:$0xff]
                  %429 = vst [vmem:[%s405 + $0x58] sm:$0xff] %v428
                  %v430 = vld [vmem:[%s404 + $0xc0] sm:$0xff]
                  %431 = vst [vmem:[%s405 + $0x60] sm:$0xff] %v430
                  %v432 = vld [vmem:[%s404 + $0xd0] sm:$0xff]
                  %433 = vst [vmem:[%s405 + $0x68] sm:$0xff] %v432
                  %v434 = vld [vmem:[%s404 + $0xe0] sm:$0xff]
                  %435 = vst [vmem:[%s405 + $0x70] sm:$0xff] %v434
                  %v436 = vld [vmem:[%s404 + $0xf0] sm:$0xff]
                  %437 = vst [vmem:[%s405 + $0x78] sm:$0xff] %v436
                  %v438 = vld [vmem:[%s404 + $0x100] sm:$0xff]
                  %439 = vst [vmem:[%s405 + $0x80] sm:$0xff] %v438
                  %v440 = vld [vmem:[%s404 + $0x110] sm:$0xff]
                  %441 = vst [vmem:[%s405 + $0x88] sm:$0xff] %v440
                  %v442 = vld [vmem:[%s404 + $0x120] sm:$0xff]
                  %443 = vst [vmem:[%s405 + $0x90] sm:$0xff] %v442
                  %v444 = vld [vmem:[%s404 + $0x130] sm:$0xff]
                  %445 = vst [vmem:[%s405 + $0x98] sm:$0xff] %v444
                  %v446 = vld [vmem:[%s404 + $0x140] sm:$0xff]
                  %447 = vst [vmem:[%s405 + $0xa0] sm:$0xff] %v446
                  %v448 = vld [vmem:[%s404 + $0x150] sm:$0xff]
                  %449 = vst [vmem:[%s405 + $0xa8] sm:$0xff] %v448
                  %v450 = vld [vmem:[%s404 + $0x160] sm:$0xff]
                  %451 = vst [vmem:[%s405 + $0xb0] sm:$0xff] %v450
                  %v452 = vld [vmem:[%s404 + $0x170] sm:$0xff]
                  %453 = vst [vmem:[%s405 + $0xb8] sm:$0xff] %v452
                  %v454 = vld [vmem:[%s404 + $0x180] sm:$0xff]
                  %455 = vst [vmem:[%s405 + $0xc0] sm:$0xff] %v454
                  %v456 = vld [vmem:[%s404 + $0x190] sm:$0xff]
                  %457 = vst [vmem:[%s405 + $0xc8] sm:$0xff] %v456
                  %v458 = vld [vmem:[%s404 + $0x1a0] sm:$0xff]
                  %459 = vst [vmem:[%s405 + $0xd0] sm:$0xff] %v458
                  %v460 = vld [vmem:[%s404 + $0x1b0] sm:$0xff]
                  %461 = vst [vmem:[%s405 + $0xd8] sm:$0xff] %v460
                  %v462 = vld [vmem:[%s404 + $0x1c0] sm:$0xff]
                  %463 = vst [vmem:[%s405 + $0xe0] sm:$0xff] %v462
                  %v464 = vld [vmem:[%s404 + $0x1d0] sm:$0xff]
                  %465 = vst [vmem:[%s405 + $0xe8] sm:$0xff] %v464
                  %v466 = vld [vmem:[%s404 + $0x1e0] sm:$0xff]
                  %467 = vst [vmem:[%s405 + $0xf0] sm:$0xff] %v466
                  %v468 = vld [vmem:[%s404 + $0x1f0] sm:$0xff]
                  %469 = vst [vmem:[%s405 + $0xf8] sm:$0xff] %v468
                $region76: #{mlp_forward.1} parent=70 // loop_footer
                  %s403 = sadd.s32 1, %s399
                $region77: #{mlp_forward.1} parent=70 // loop_footer_branch
                  %398 = sbr.rel target = $region73
                $region78: #{mlp_forward.1} parent=70 // loop_exit
                  _
              $region71: #{mlp_forward.1} parent=55 // pred_fallthru
                _
              // Predicated region
              $region79: #{mlp_forward.1} parent=55 // pred_check
                _
              $region80: #{mlp_forward.1} parent=55 // pred_check_branch
                %471 = sbr.rel target = $region82
              $region81: #{mlp_forward.1} parent=55 // pred_region
                _
              $region82: #{mlp_forward.1} parent=55 // pred_fallthru
                _
            $region56: #{mlp_forward.1} parent=51 // pred_fallthru
              _
            // Predicated region
            $region57: #{mlp_forward.1} parent=51 // pred_check
              _
            $region58: #{mlp_forward.1} parent=51 // pred_check_branch
              %321 = sbr.rel target = $region60
            $region59: #{mlp_forward.1} parent=51 // pred_region
              %s323 = ssub.s32 256, 1
              loop: start=0, step=1, limit=1
              $region61: #{mlp_forward.1} parent=59 // loop_pre_header
                _
              $region62: #{mlp_forward.1} parent=59 // loop_header
                %s325 = sphi 0, %s329
                %p326 = scmp.ge.s32.totalorder %s325, 1
                %s330 = sphi %s315, %s315
                %s331 = sphi %s312, %s312
              $region63: #{mlp_forward.1} parent=59 // loop_header_branch
                %328 = sbr.rel (%p326) target = $region67
              $region64: #{mlp_forward.1} parent=59 // loop_body
                %v332 = vld [vmem:[%s330] sm:%s323]
                %333 = vst [vmem:[%s331] sm:%s323] %v332
                %v334 = vld [vmem:[%s330 + $0x10] sm:%s323]
                %335 = vst [vmem:[%s331 + $0x8] sm:%s323] %v334
                %v336 = vld [vmem:[%s330 + $0x20] sm:%s323]
                %337 = vst [vmem:[%s331 + $0x10] sm:%s323] %v336
                %v338 = vld [vmem:[%s330 + $0x30] sm:%s323]
                %339 = vst [vmem:[%s331 + $0x18] sm:%s323] %v338
                %v340 = vld [vmem:[%s330 + $0x40] sm:%s323]
                %341 = vst [vmem:[%s331 + $0x20] sm:%s323] %v340
                %v342 = vld [vmem:[%s330 + $0x50] sm:%s323]
                %343 = vst [vmem:[%s331 + $0x28] sm:%s323] %v342
                %v344 = vld [vmem:[%s330 + $0x60] sm:%s323]
                %345 = vst [vmem:[%s331 + $0x30] sm:%s323] %v344
                %v346 = vld [vmem:[%s330 + $0x70] sm:%s323]
                %347 = vst [vmem:[%s331 + $0x38] sm:%s323] %v346
                %v348 = vld [vmem:[%s330 + $0x80] sm:%s323]
                %349 = vst [vmem:[%s331 + $0x40] sm:%s323] %v348
                %v350 = vld [vmem:[%s330 + $0x90] sm:%s323]
                %351 = vst [vmem:[%s331 + $0x48] sm:%s323] %v350
                %v352 = vld [vmem:[%s330 + $0xa0] sm:%s323]
                %353 = vst [vmem:[%s331 + $0x50] sm:%s323] %v352
                %v354 = vld [vmem:[%s330 + $0xb0] sm:%s323]
                %355 = vst [vmem:[%s331 + $0x58] sm:%s323] %v354
                %v356 = vld [vmem:[%s330 + $0xc0] sm:%s323]
                %357 = vst [vmem:[%s331 + $0x60] sm:%s323] %v356
                %v358 = vld [vmem:[%s330 + $0xd0] sm:%s323]
                %359 = vst [vmem:[%s331 + $0x68] sm:%s323] %v358
                %v360 = vld [vmem:[%s330 + $0xe0] sm:%s323]
                %361 = vst [vmem:[%s331 + $0x70] sm:%s323] %v360
                %v362 = vld [vmem:[%s330 + $0xf0] sm:%s323]
                %363 = vst [vmem:[%s331 + $0x78] sm:%s323] %v362
                %v364 = vld [vmem:[%s330 + $0x100] sm:%s323]
                %365 = vst [vmem:[%s331 + $0x80] sm:%s323] %v364
                %v366 = vld [vmem:[%s330 + $0x110] sm:%s323]
                %367 = vst [vmem:[%s331 + $0x88] sm:%s323] %v366
                %v368 = vld [vmem:[%s330 + $0x120] sm:%s323]
                %369 = vst [vmem:[%s331 + $0x90] sm:%s323] %v368
                %v370 = vld [vmem:[%s330 + $0x130] sm:%s323]
                %371 = vst [vmem:[%s331 + $0x98] sm:%s323] %v370
                %v372 = vld [vmem:[%s330 + $0x140] sm:%s323]
                %373 = vst [vmem:[%s331 + $0xa0] sm:%s323] %v372
                %v374 = vld [vmem:[%s330 + $0x150] sm:%s323]
                %375 = vst [vmem:[%s331 + $0xa8] sm:%s323] %v374
                %v376 = vld [vmem:[%s330 + $0x160] sm:%s323]
                %377 = vst [vmem:[%s331 + $0xb0] sm:%s323] %v376
                %v378 = vld [vmem:[%s330 + $0x170] sm:%s323]
                %379 = vst [vmem:[%s331 + $0xb8] sm:%s323] %v378
                %v380 = vld [vmem:[%s330 + $0x180] sm:%s323]
                %381 = vst [vmem:[%s331 + $0xc0] sm:%s323] %v380
                %v382 = vld [vmem:[%s330 + $0x190] sm:%s323]
                %383 = vst [vmem:[%s331 + $0xc8] sm:%s323] %v382
                %v384 = vld [vmem:[%s330 + $0x1a0] sm:%s323]
                %385 = vst [vmem:[%s331 + $0xd0] sm:%s323] %v384
                %v386 = vld [vmem:[%s330 + $0x1b0] sm:%s323]
                %387 = vst [vmem:[%s331 + $0xd8] sm:%s323] %v386
                %v388 = vld [vmem:[%s330 + $0x1c0] sm:%s323]
                %389 = vst [vmem:[%s331 + $0xe0] sm:%s323] %v388
                %v390 = vld [vmem:[%s330 + $0x1d0] sm:%s323]
                %391 = vst [vmem:[%s331 + $0xe8] sm:%s323] %v390
                %v392 = vld [vmem:[%s330 + $0x1e0] sm:%s323]
                %393 = vst [vmem:[%s331 + $0xf0] sm:%s323] %v392
                %v394 = vld [vmem:[%s330 + $0x1f0] sm:%s323]
                %395 = vst [vmem:[%s331 + $0xf8] sm:%s323] %v394
              $region65: #{mlp_forward.1} parent=59 // loop_footer
                %s329 = sadd.s32 1, %s325
              $region66: #{mlp_forward.1} parent=59 // loop_footer_branch
                %324 = sbr.rel target = $region62
              $region67: #{mlp_forward.1} parent=59 // loop_exit
                _
            $region60: #{mlp_forward.1} parent=51 // pred_fallthru
              _
          $region52: #{mlp_forward.1} parent=47 // pred_fallthru
            _
          %472 = vnop
        $region48: #{mlp_forward.1} parent=39 // pred_fallthru
          _
        // Predicated region
        $region83: #{mlp_forward.1} parent=39 // pred_check
          %p473 = pneg %p225
        $region84: #{mlp_forward.1} parent=39 // pred_check_branch
          %475 = sbr.rel (%p473) target = $region86
        $region85: #{mlp_forward.1} parent=39 // pred_region
          %s476 = smul.u32 2, %s23
          %p477 = scmp.lt.s32.totalorder %s476, 3
          %s478 = scalar_select %p477, %s476, 3
          %s479 = scalar_lea.vmem %s8, %s478
          %s480 = smul.u32 2, %s23
        $region86: #{mlp_forward.1} parent=39 // pred_fallthru
          _
      $region40: #{mlp_forward.1} parent=5 // pred_fallthru
        _
      %p481 = scmp.le.s32.totalorder 1, %s15
      %p482 = scmp.lt.s32.totalorder %s15, 5
      %p483 = pnand %p481, %p482
      %p484 = pneg %p483
      // Predicated region
      $region87: #{mlp_forward.1} parent=5 // pred_check
        _
      $region88: #{mlp_forward.1} parent=5 // pred_check_branch
        %486 = sbr.rel (%p483) target = $region90
      $region89: #{mlp_forward.1} parent=5 // pred_region
        %s487 = ssub.s32 %s15, 1
        %s488 = sand.u32 %s192, 1
        %s489 = sand.u32 %s192, 1
        %s490 = smul.addr %s489, 256
        %s491 = scalar_lea.vmem [#allocation3], %s490
        // Predicated region
        $region91: #{mlp_forward.1} parent=89 // pred_check
          %p492 = pneg %p205
        $region92: #{mlp_forward.1} parent=89 // pred_check_branch
          %494 = sbr.rel (%p492) target = $region94
        $region93: #{mlp_forward.1} parent=89 // pred_region
          _
        $region94: #{mlp_forward.1} parent=89 // pred_fallthru
          _
        %s495 = smul.u32 16, %s24
        %p496 = scmp.lt.s32.totalorder %s495, 31
        %s497 = scalar_select %p496, %s495, 31
        %s498 = smul.addr %s497, 3
        %s499 = smul.addr %s498, 4
        %s500 = scalar_lea.vmem %s0, %s499
        %p501 = pneg %p53
        %p502 = pneg %p50
        %p503 = pneg %p74
        %p504 = pneg %p71
        %p505 = pneg %p95
        %p506 = pneg %p92
        %p507 = pneg %p116
        %p508 = pneg %p113
        %p509 = pneg %p137
        %p510 = pneg %p134
        %p511 = pneg %p158
        %p512 = pneg %p155
        %p513 = pneg %p179
        %p514 = pneg %p176
        %s515 = sand.u32 %s192, 1
        %s516 = sand.u32 %s192, 1
        %s517 = smul.addr %s516, 256
        %s518 = scalar_lea.vmem [#allocation3], %s517
        %p519 = pneg %p205
        %p520 = pneg %p202
        %s521 = smul.u32 2, %s25
        %p522 = scmp.lt.s32.totalorder %s521, 3
        %s523 = scalar_select %p522, %s521, 3
        %s524 = scalar_lea.vmem %s8, %s523
        %p525 = pneg %p231
        %p526 = pneg %p228
        %p527 = pneg %p259
        %p528 = pneg %p256
        %s529 = sand.u32 %s246, 1
        %s530 = sand.u32 %s246, 1
        %s531 = smul.addr %s530, 256
        %s532 = scalar_lea.vmem [#allocation4], %s531
        %s533 = smul.u32 16, %s24
        %p534 = scmp.lt.s32.totalorder %s533, 31
        %s535 = scalar_select %p534, %s533, 31
        %s536 = smul.addr %s535, 3
        %s537 = smul.addr %s536, 4
        %s538 = scalar_lea.vmem %s0, %s537
        %s539 = smul.u32 16, %s24
        %s540 = smul.u32 2, %s25
        %s541 = smul.u32 2, %s25
        %p542 = scmp.lt.s32.totalorder %s541, 3
        %s543 = scalar_select %p542, %s541, 3
        %s544 = scalar_lea.vmem %s8, %s543
        %s545 = smul.u32 2, %s25
        %s546 = smul.u32 16, %s24
        %s547 = smul.u32 2, %s25
        %p549 = scmp.eq.s32.totalorder %s25, 0
        // Predicated region
        $region95: #{mlp_forward.1} parent=89 // pred_check
          %p550 = pneg %p549
        $region96: #{mlp_forward.1} parent=89 // pred_check_branch
          %552 = sbr.rel (%p550) target = $region98
        $region97: #{mlp_forward.1} parent=89 // pred_region
          %v553 = vld [vmem:[%s538] sm:$0xff]
          %v554 = vld [vmem:[%s538 + $0x8] sm:$0xf]
          %v555 = vld [vmem:[%s538 + $0xc] sm:$0xff]
          %v556 = vld [vmem:[%s538 + $0x14] sm:$0xf]
          %v557 = vld [vmem:[%s538 + $0x18] sm:$0xff]
          %v558 = vld [vmem:[%s538 + $0x20] sm:$0xf]
          %v559 = vld [vmem:[%s538 + $0x24] sm:$0xff]
          %v560 = vld [vmem:[%s538 + $0x2c] sm:$0xf]
          %v561 = vld [vmem:[%s538 + $0x30] sm:$0xff]
          %v562 = vld [vmem:[%s538 + $0x38] sm:$0xf]
          %v563 = vld [vmem:[%s538 + $0x3c] sm:$0xff]
          %v564 = vld [vmem:[%s538 + $0x44] sm:$0xf]
          %v565 = vld [vmem:[%s538 + $0x48] sm:$0xff]
          %v566 = vld [vmem:[%s538 + $0x50] sm:$0xf]
          %v567 = vld [vmem:[%s538 + $0x54] sm:$0xff]
          %v568 = vld [vmem:[%s538 + $0x5c] sm:$0xf]
          %v569 = vld [vmem:[%s538 + $0x60] sm:$0xff]
          %v570 = vld [vmem:[%s538 + $0x68] sm:$0xf]
          %v571 = vld [vmem:[%s538 + $0x6c] sm:$0xff]
          %v572 = vld [vmem:[%s538 + $0x74] sm:$0xf]
          %v573 = vld [vmem:[%s538 + $0x78] sm:$0xff]
          %v574 = vld [vmem:[%s538 + $0x80] sm:$0xf]
          %v575 = vld [vmem:[%s538 + $0x84] sm:$0xff]
          %v576 = vld [vmem:[%s538 + $0x8c] sm:$0xf]
          %v577 = vld [vmem:[%s538 + $0x90] sm:$0xff]
          %v578 = vld [vmem:[%s538 + $0x98] sm:$0xf]
          %v579 = vld [vmem:[%s538 + $0x9c] sm:$0xff]
          %v580 = vld [vmem:[%s538 + $0xa4] sm:$0xf]
          %v581 = vld [vmem:[%s538 + $0xa8] sm:$0xff]
          %v582 = vld [vmem:[%s538 + $0xb0] sm:$0xf]
          %v583 = vld [vmem:[%s538 + $0xb4] sm:$0xff]
          %v584 = vld [vmem:[%s538 + $0xbc] sm:$0xf]
          %v585 = vld [vmem:[%s1] sm:$0xff]
          %v586 = vld [vmem:[%s1 + $0x8] sm:$0xff]
          %v587 = vld [vmem:[%s1 + $0x10] sm:$0xff]
          %v588 = vld [vmem:[%s1 + $0x18] sm:$0xff]
          %v589 = vld [vmem:[%s1 + $0x20] sm:$0xff]
          %v590 = vld [vmem:[%s1 + $0x28] sm:$0xff]
          %v591 = vld [vmem:[%s1 + $0x30] sm:$0xff]
          %v592 = vld [vmem:[%s1 + $0x38] sm:$0xff]
          %v593 = vld [vmem:[%s1 + $0x40] sm:$0xff]
          %v594 = vld [vmem:[%s1 + $0x48] sm:$0xff]
          %v595 = vld [vmem:[%s1 + $0x50] sm:$0xff]
          %v596 = vld [vmem:[%s1 + $0x58] sm:$0xff]
          %v597 = vld [vmem:[%s1 + $0x60] sm:$0xff]
          %v598 = vld [vmem:[%s1 + $0x68] sm:$0xff]
          %v599 = vld [vmem:[%s1 + $0x70] sm:$0xff]
          %v600 = vld [vmem:[%s1 + $0x78] sm:$0xff]
          %v601 = vld [vmem:[%s1 + $0x80] sm:$0xff]
          %v602 = vld [vmem:[%s1 + $0x88] sm:$0xff]
          %v603 = vld [vmem:[%s1 + $0x90] sm:$0xff]
          %v604 = vld [vmem:[%s1 + $0x98] sm:$0xff]
          %v605 = vld [vmem:[%s1 + $0xa0] sm:$0xff]
          %v606 = vld [vmem:[%s1 + $0xa8] sm:$0xff]
          %v607 = vld [vmem:[%s1 + $0xb0] sm:$0xff]
          %v608 = vld [vmem:[%s1 + $0xb8] sm:$0xff]
          %v609 = vld [vmem:[%s1 + $0xc0] sm:$0xff]
          %v610 = vld [vmem:[%s1 + $0xc8] sm:$0xff]
          %v611 = vld [vmem:[%s1 + $0xd0] sm:$0xff]
          %v612 = vld [vmem:[%s1 + $0xd8] sm:$0xff]
          %v613 = vld [vmem:[%s1 + $0xe0] sm:$0xff]
          %v614 = vld [vmem:[%s1 + $0xe8] sm:$0xff]
          %v615 = vld [vmem:[%s1 + $0xf0] sm:$0xff]
          %v616 = vld [vmem:[%s1 + $0xf8] sm:$0xff]
          %v617 = vld [vmem:[%s1 + $0x100] sm:$0xff]
          %v618 = vld [vmem:[%s1 + $0x108] sm:$0xff]
          %v619 = vld [vmem:[%s1 + $0x110] sm:$0xff]
          %v620 = vld [vmem:[%s1 + $0x118] sm:$0xff]
          %v621 = vld [vmem:[%s1 + $0x120] sm:$0xff]
          %v622 = vld [vmem:[%s1 + $0x128] sm:$0xff]
          %v623 = vld [vmem:[%s1 + $0x130] sm:$0xff]
          %v624 = vld [vmem:[%s1 + $0x138] sm:$0xff]
          %v625 = vld [vmem:[%s1 + $0x140] sm:$0xff]
          %v626 = vld [vmem:[%s1 + $0x148] sm:$0xff]
          %v627 = vld [vmem:[%s1 + $0x150] sm:$0xff]
          %v628 = vld [vmem:[%s1 + $0x158] sm:$0xff]
          %v629 = vld [vmem:[%s1 + $0x160] sm:$0xff]
          %v630 = vld [vmem:[%s1 + $0x168] sm:$0xff]
          %v631 = vld [vmem:[%s1 + $0x170] sm:$0xff]
          %v632 = vld [vmem:[%s1 + $0x178] sm:$0xff]
          %v633 = vld [vmem:[%s2] sm:$0x3]
          %v635 = vlaneseq
          %v636 = vshrl.u32 %v635, 7
          %v637 = vsub.s32 0, %v636
          %v638 = vrot.slane %v633, %v637
          %v639 = vlaneseq
          %v640 = vshrl.u32 %v639, 7
          %v641 = vsub.s32 1, %v640
          %v642 = vrot.slane %v633, %v641
          %v677 = vunpack.c.l.b16 %v553
          %v678 = vunpack.c.h.b16 %v553
          %v679 = vunpack.c.l.b16 %v554
          %v680 = vunpack.c.l.b16 %v555
          %v681 = vunpack.c.h.b16 %v555
          %v682 = vunpack.c.l.b16 %v556
          %v683 = vunpack.c.l.b16 %v557
          %v684 = vunpack.c.h.b16 %v557
          %v685 = vunpack.c.l.b16 %v558
          %v686 = vunpack.c.l.b16 %v559
          %v687 = vunpack.c.h.b16 %v559
          %v688 = vunpack.c.l.b16 %v560
          %v689 = vunpack.c.l.b16 %v561
          %v690 = vunpack.c.h.b16 %v561
          %v691 = vunpack.c.l.b16 %v562
          %v692 = vunpack.c.l.b16 %v563
          %v693 = vunpack.c.h.b16 %v563
          %v694 = vunpack.c.l.b16 %v564
          %v695 = vunpack.c.l.b16 %v565
          %v696 = vunpack.c.h.b16 %v565
          %v697 = vunpack.c.l.b16 %v566
          %v698 = vunpack.c.l.b16 %v567
          %v699 = vunpack.c.h.b16 %v567
          %v700 = vunpack.c.l.b16 %v568
          %v701 = vunpack.c.l.b16 %v569
          %v702 = vunpack.c.h.b16 %v569
          %v703 = vunpack.c.l.b16 %v570
          %v704 = vunpack.c.l.b16 %v571
          %v705 = vunpack.c.h.b16 %v571
          %v706 = vunpack.c.l.b16 %v572
          %v707 = vunpack.c.l.b16 %v573
          %v708 = vunpack.c.h.b16 %v573
          %v709 = vunpack.c.l.b16 %v574
          %v710 = vunpack.c.l.b16 %v575
          %v711 = vunpack.c.h.b16 %v575
          %v712 = vunpack.c.l.b16 %v576
          %v713 = vunpack.c.l.b16 %v577
          %v714 = vunpack.c.h.b16 %v577
          %v715 = vunpack.c.l.b16 %v578
          %v716 = vunpack.c.l.b16 %v579
          %v717 = vunpack.c.h.b16 %v579
          %v718 = vunpack.c.l.b16 %v580
          %v719 = vunpack.c.l.b16 %v581
          %v720 = vunpack.c.h.b16 %v581
          %v721 = vunpack.c.l.b16 %v582
          %v722 = vunpack.c.l.b16 %v583
          %v723 = vunpack.c.h.b16 %v583
          %v724 = vunpack.c.l.b16 %v584
          %v725 = vpack.c.b16 %v680, %v677
          %v726 = vpack.c.b16 %v681, %v678
          %v727 = vpack.c.b16 %v682, %v679
          %v728 = vpack.c.b16 %v686, %v683
          %v729 = vpack.c.b16 %v687, %v684
          %v730 = vpack.c.b16 %v688, %v685
          %v731 = vpack.c.b16 %v692, %v689
          %v732 = vpack.c.b16 %v693, %v690
          %v733 = vpack.c.b16 %v694, %v691
          %v734 = vpack.c.b16 %v698, %v695
          %v735 = vpack.c.b16 %v699, %v696
          %v736 = vpack.c.b16 %v700, %v697
          %v737 = vpack.c.b16 %v704, %v701
          %v738 = vpack.c.b16 %v705, %v702
          %v739 = vpack.c.b16 %v706, %v703
          %v740 = vpack.c.b16 %v710, %v707
          %v741 = vpack.c.b16 %v711, %v708
          %v742 = vpack.c.b16 %v712, %v709
          %v743 = vpack.c.b16 %v716, %v713
          %v744 = vpack.c.b16 %v717, %v714
          %v745 = vpack.c.b16 %v718, %v715
          %v746 = vpack.c.b16 %v722, %v719
          %v747 = vpack.c.b16 %v723, %v720
          %v748 = vpack.c.b16 %v724, %v721
          %v821 = vunpack.c.l.b16 %v585
          %v822 = vunpack.c.h.b16 %v585
          %v823 = vunpack.c.l.b16 %v586
          %v824 = vunpack.c.h.b16 %v586
          %v825 = vunpack.c.l.b16 %v587
          %v826 = vunpack.c.h.b16 %v587
          %v827 = vunpack.c.l.b16 %v588
          %v828 = vunpack.c.h.b16 %v588
          %v829 = vunpack.c.l.b16 %v589
          %v830 = vunpack.c.h.b16 %v589
          %v831 = vunpack.c.l.b16 %v590
          %v832 = vunpack.c.h.b16 %v590
          %v833 = vunpack.c.l.b16 %v591
          %v834 = vunpack.c.h.b16 %v591
          %v835 = vunpack.c.l.b16 %v592
          %v836 = vunpack.c.h.b16 %v592
          %v837 = vunpack.c.l.b16 %v593
          %v838 = vunpack.c.h.b16 %v593
          %v839 = vunpack.c.l.b16 %v594
          %v840 = vunpack.c.h.b16 %v594
          %v841 = vunpack.c.l.b16 %v595
          %v842 = vunpack.c.h.b16 %v595
          %v843 = vunpack.c.l.b16 %v596
          %v844 = vunpack.c.h.b16 %v596
          %v845 = vunpack.c.l.b16 %v597
          %v846 = vunpack.c.h.b16 %v597
          %v847 = vunpack.c.l.b16 %v598
          %v848 = vunpack.c.h.b16 %v598
          %v849 = vunpack.c.l.b16 %v599
          %v850 = vunpack.c.h.b16 %v599
          %v851 = vunpack.c.l.b16 %v600
          %v852 = vunpack.c.h.b16 %v600
          %v853 = vunpack.c.l.b16 %v601
          %v854 = vunpack.c.h.b16 %v601
          %v855 = vunpack.c.l.b16 %v602
          %v856 = vunpack.c.h.b16 %v602
          %v857 = vunpack.c.l.b16 %v603
          %v858 = vunpack.c.h.b16 %v603
          %v859 = vunpack.c.l.b16 %v604
          %v860 = vunpack.c.h.b16 %v604
          %v861 = vunpack.c.l.b16 %v605
          %v862 = vunpack.c.h.b16 %v605
          %v863 = vunpack.c.l.b16 %v606
          %v864 = vunpack.c.h.b16 %v606
          %v865 = vunpack.c.l.b16 %v607
          %v866 = vunpack.c.h.b16 %v607
          %v867 = vunpack.c.l.b16 %v608
          %v868 = vunpack.c.h.b16 %v608
          %v869 = vunpack.c.l.b16 %v609
          %v870 = vunpack.c.h.b16 %v609
          %v871 = vunpack.c.l.b16 %v610
          %v872 = vunpack.c.h.b16 %v610
          %v873 = vunpack.c.l.b16 %v611
          %v874 = vunpack.c.h.b16 %v611
          %v875 = vunpack.c.l.b16 %v612
          %v876 = vunpack.c.h.b16 %v612
          %v877 = vunpack.c.l.b16 %v613
          %v878 = vunpack.c.h.b16 %v613
          %v879 = vunpack.c.l.b16 %v614
          %v880 = vunpack.c.h.b16 %v614
          %v881 = vunpack.c.l.b16 %v615
          %v882 = vunpack.c.h.b16 %v615
          %v883 = vunpack.c.l.b16 %v616
          %v884 = vunpack.c.h.b16 %v616
          %v885 = vunpack.c.l.b16 %v617
          %v886 = vunpack.c.h.b16 %v617
          %v887 = vunpack.c.l.b16 %v618
          %v888 = vunpack.c.h.b16 %v618
          %v889 = vunpack.c.l.b16 %v619
          %v890 = vunpack.c.h.b16 %v619
          %v891 = vunpack.c.l.b16 %v620
          %v892 = vunpack.c.h.b16 %v620
          %v893 = vunpack.c.l.b16 %v621
          %v894 = vunpack.c.h.b16 %v621
          %v895 = vunpack.c.l.b16 %v622
          %v896 = vunpack.c.h.b16 %v622
          %v897 = vunpack.c.l.b16 %v623
          %v898 = vunpack.c.h.b16 %v623
          %v899 = vunpack.c.l.b16 %v624
          %v900 = vunpack.c.h.b16 %v624
          %v901 = vunpack.c.l.b16 %v625
          %v902 = vunpack.c.h.b16 %v625
          %v903 = vunpack.c.l.b16 %v626
          %v904 = vunpack.c.h.b16 %v626
          %v905 = vunpack.c.l.b16 %v627
          %v906 = vunpack.c.h.b16 %v627
          %v907 = vunpack.c.l.b16 %v628
          %v908 = vunpack.c.h.b16 %v628
          %v909 = vunpack.c.l.b16 %v629
          %v910 = vunpack.c.h.b16 %v629
          %v911 = vunpack.c.l.b16 %v630
          %v912 = vunpack.c.h.b16 %v630
          %v913 = vunpack.c.l.b16 %v631
          %v914 = vunpack.c.h.b16 %v631
          %v915 = vunpack.c.l.b16 %v632
          %v916 = vunpack.c.h.b16 %v632
          %v917 = vpack.c.b16 %v823, %v821
          %v918 = vpack.c.b16 %v824, %v822
          %v919 = vpack.c.b16 %v827, %v825
          %v920 = vpack.c.b16 %v828, %v826
          %v921 = vpack.c.b16 %v831, %v829
          %v922 = vpack.c.b16 %v832, %v830
          %v923 = vpack.c.b16 %v835, %v833
          %v924 = vpack.c.b16 %v836, %v834
          %v925 = vpack.c.b16 %v839, %v837
          %v926 = vpack.c.b16 %v840, %v838
          %v927 = vpack.c.b16 %v843, %v841
          %v928 = vpack.c.b16 %v844, %v842
          %v929 = vpack.c.b16 %v847, %v845
          %v930 = vpack.c.b16 %v848, %v846
          %v931 = vpack.c.b16 %v851, %v849
          %v932 = vpack.c.b16 %v852, %v850
          %v933 = vpack.c.b16 %v855, %v853
          %v934 = vpack.c.b16 %v856, %v854
          %v935 = vpack.c.b16 %v859, %v857
          %v936 = vpack.c.b16 %v860, %v858
          %v937 = vpack.c.b16 %v863, %v861
          %v938 = vpack.c.b16 %v864, %v862
          %v939 = vpack.c.b16 %v867, %v865
          %v940 = vpack.c.b16 %v868, %v866
          %v941 = vpack.c.b16 %v871, %v869
          %v942 = vpack.c.b16 %v872, %v870
          %v943 = vpack.c.b16 %v875, %v873
          %v944 = vpack.c.b16 %v876, %v874
          %v945 = vpack.c.b16 %v879, %v877
          %v946 = vpack.c.b16 %v880, %v878
          %v947 = vpack.c.b16 %v883, %v881
          %v948 = vpack.c.b16 %v884, %v882
          %v949 = vpack.c.b16 %v887, %v885
          %v950 = vpack.c.b16 %v888, %v886
          %v951 = vpack.c.b16 %v891, %v889
          %v952 = vpack.c.b16 %v892, %v890
          %v953 = vpack.c.b16 %v895, %v893
          %v954 = vpack.c.b16 %v896, %v894
          %v955 = vpack.c.b16 %v899, %v897
          %v956 = vpack.c.b16 %v900, %v898
          %v957 = vpack.c.b16 %v903, %v901
          %v958 = vpack.c.b16 %v904, %v902
          %v959 = vpack.c.b16 %v907, %v905
          %v960 = vpack.c.b16 %v908, %v906
          %v961 = vpack.c.b16 %v911, %v909
          %v962 = vpack.c.b16 %v912, %v910
          %v963 = vpack.c.b16 %v915, %v913
          %v964 = vpack.c.b16 %v916, %v914
          %1013 = vmatprep.subr.bf16.mxu0 %v932
          %1014 = vmatpush1.bf16.msra.mxu0 %v931
          %1015 = vmatprep.subr.bf16.mxu0 %v930
          %1016 = vmatpush1.bf16.msra.mxu0 %v929
          %1017 = vmatprep.subr.bf16.mxu0 %v928
          %1018 = vmatpush1.bf16.msra.mxu0 %v927
          %1019 = vmatprep.subr.bf16.mxu0 %v926
          %1020 = vmatpush1.bf16.msra.mxu0 %v925
          %1021 = vmatprep.subr.bf16.mxu0 %v924
          %1022 = vmatpush1.bf16.msra.mxu0 %v923
          %1023 = vmatprep.subr.bf16.mxu0 %v922
          %1024 = vmatpush1.bf16.msra.mxu0 %v921
          %1025 = vmatprep.subr.bf16.mxu0 %v920
          %1026 = vmatpush1.bf16.msra.mxu0 %v919
          %1027 = vmatprep.subr.bf16.mxu0 %v918
          %1028 = vmatpush1.bf16.msra.mxu0 %v917
          %1029 = vmatprep.subr.bf16.mxu0 %v948
          %1030 = vmatpush2.bf16.msra.mxu0 %v947
          %1031 = vmatprep.subr.bf16.mxu0 %v946
          %1032 = vmatpush2.bf16.msra.mxu0 %v945
          %1033 = vmatprep.subr.bf16.mxu0 %v944
          %1034 = vmatpush2.bf16.msra.mxu0 %v943
          %1035 = vmatprep.subr.bf16.mxu0 %v942
          %1036 = vmatpush2.bf16.msra.mxu0 %v941
          %1037 = vmatprep.subr.bf16.mxu0 %v940
          %1038 = vmatpush2.bf16.msra.mxu0 %v939
          %1039 = vmatprep.subr.bf16.mxu0 %v938
          %1040 = vmatpush2.bf16.msra.mxu0 %v937
          %1041 = vmatprep.subr.bf16.mxu0 %v936
          %1042 = vmatpush2.bf16.msra.mxu0 %v935
          %1043 = vmatprep.subr.bf16.mxu0 %v934
          %1044 = vmatpush2.bf16.msra.mxu0 %v933
          %1045 = vmatprep.mubr.bf16.mxu0 %v726
          %1046 = vmatmul.mubr.bf16.gmra.mxu0 %v725
          %v1047 = vpop.f32.mrf.mxu0
          %v1048 = vadd.f32 %v638, %v1047
          %v1049 = vpop.f32.mrf.mxu0
          %v1050 = vadd.f32 %v642, %v1049
          %v1051 = vpop.f32.mrf.mxu0
          %v1052 = vadd.f32 %v638, %v1051
          %v1053 = vpop.f32.mrf.mxu0
          %v1054 = vadd.f32 %v642, %v1053
          %1055 = vmatprep.mubr.bf16.mxu0 %v729
          %1056 = vmatmul.mubr.bf16.gmra.mxu0 %v728
          %v1057 = vpop.f32.mrf.mxu0
          %v1058 = vadd.f32 %v638, %v1057
          %v1059 = vpop.f32.mrf.mxu0
          %v1060 = vadd.f32 %v642, %v1059
          %v1061 = vpop.f32.mrf.mxu0
          %v1062 = vadd.f32 %v638, %v1061
          %v1063 = vpop.f32.mrf.mxu0
          %v1064 = vadd.f32 %v642, %v1063
          %1065 = vmatprep.mubr.bf16.mxu0 %v732
          %1066 = vmatmul.mubr.bf16.gmra.mxu0 %v731
          %v1067 = vpop.f32.mrf.mxu0
          %v1068 = vadd.f32 %v638, %v1067
          %v1069 = vpop.f32.mrf.mxu0
          %v1070 = vadd.f32 %v642, %v1069
          %v1071 = vpop.f32.mrf.mxu0
          %v1072 = vadd.f32 %v638, %v1071
          %v1073 = vpop.f32.mrf.mxu0
          %v1074 = vadd.f32 %v642, %v1073
          %1075 = vmatprep.mubr.bf16.mxu0 %v735
          %1076 = vmatmul.mubr.bf16.gmra.mxu0 %v734
          %v1077 = vpop.f32.mrf.mxu0
          %v1078 = vadd.f32 %v638, %v1077
          %v1079 = vpop.f32.mrf.mxu0
          %v1080 = vadd.f32 %v642, %v1079
          %v1081 = vpop.f32.mrf.mxu0
          %v1082 = vadd.f32 %v638, %v1081
          %v1083 = vpop.f32.mrf.mxu0
          %v1084 = vadd.f32 %v642, %v1083
          %1085 = vmatprep.mubr.bf16.mxu0 %v738
          %1086 = vmatmul.mubr.bf16.gmra.mxu0 %v737
          %v1087 = vpop.f32.mrf.mxu0
          %v1088 = vadd.f32 %v638, %v1087
          %v1089 = vpop.f32.mrf.mxu0
          %v1090 = vadd.f32 %v642, %v1089
          %v1091 = vpop.f32.mrf.mxu0
          %v1092 = vadd.f32 %v638, %v1091
          %v1093 = vpop.f32.mrf.mxu0
          %v1094 = vadd.f32 %v642, %v1093
          %1095 = vmatprep.mubr.bf16.mxu0 %v741
          %1096 = vmatmul.mubr.bf16.gmra.mxu0 %v740
          %v1097 = vpop.f32.mrf.mxu0
          %v1098 = vadd.f32 %v638, %v1097
          %v1099 = vpop.f32.mrf.mxu0
          %v1100 = vadd.f32 %v642, %v1099
          %v1101 = vpop.f32.mrf.mxu0
          %v1102 = vadd.f32 %v638, %v1101
          %v1103 = vpop.f32.mrf.mxu0
          %v1104 = vadd.f32 %v642, %v1103
          %1105 = vmatprep.mubr.bf16.mxu0 %v744
          %1106 = vmatmul.mubr.bf16.gmra.mxu0 %v743
          %v1107 = vpop.f32.mrf.mxu0
          %v1108 = vadd.f32 %v638, %v1107
          %v1109 = vpop.f32.mrf.mxu0
          %v1110 = vadd.f32 %v642, %v1109
          %v1111 = vpop.f32.mrf.mxu0
          %v1112 = vadd.f32 %v638, %v1111
          %v1113 = vpop.f32.mrf.mxu0
          %v1114 = vadd.f32 %v642, %v1113
          %1115 = vmatprep.mubr.bf16.mxu0 %v747
          %1116 = vmatmul.mubr.bf16.gmra.mxu0 %v746
          %v1117 = vpop.f32.mrf.mxu0
          %v1118 = vadd.f32 %v638, %v1117
          %v1119 = vpop.f32.mrf.mxu0
          %v1120 = vadd.f32 %v642, %v1119
          %v1121 = vpop.f32.mrf.mxu0
          %v1122 = vadd.f32 %v638, %v1121
          %v1123 = vpop.f32.mrf.mxu0
          %v1124 = vadd.f32 %v642, %v1123
          %1125 = vdwg.mxu0
          %1126 = vmatprep.subr.bf16.mxu0 %v964
          %1127 = vmatpush1.bf16.msra.mxu0 %v963
          %1128 = vmatprep.subr.bf16.mxu0 %v962
          %1129 = vmatpush1.bf16.msra.mxu0 %v961
          %1130 = vmatprep.subr.bf16.mxu0 %v960
          %1131 = vmatpush1.bf16.msra.mxu0 %v959
          %1132 = vmatprep.subr.bf16.mxu0 %v958
          %1133 = vmatpush1.bf16.msra.mxu0 %v957
          %1134 = vmatprep.subr.bf16.mxu0 %v956
          %1135 = vmatpush1.bf16.msra.mxu0 %v955
          %1136 = vmatprep.subr.bf16.mxu0 %v954
          %1137 = vmatpush1.bf16.msra.mxu0 %v953
          %1138 = vmatprep.subr.bf16.mxu0 %v952
          %1139 = vmatpush1.bf16.msra.mxu0 %v951
          %1140 = vmatprep.subr.bf16.mxu0 %v950
          %1141 = vmatpush1.bf16.msra.mxu0 %v949
          %1142 = vmatprep.subr.bf16.mxu0 0
          %1143 = vmatpush2.bf16.msra.mxu0 0
          %1144 = vmatprep.subr.bf16.mxu0 0
          %1145 = vmatpush2.bf16.msra.mxu0 0
          %1146 = vmatprep.subr.bf16.mxu0 0
          %1147 = vmatpush2.bf16.msra.mxu0 0
          %1148 = vmatprep.subr.bf16.mxu0 0
          %1149 = vmatpush2.bf16.msra.mxu0 0
          %1150 = vmatprep.subr.bf16.mxu0 0
          %1151 = vmatpush2.bf16.msra.mxu0 0
          %1152 = vmatprep.subr.bf16.mxu0 0
          %1153 = vmatpush2.bf16.msra.mxu0 0
          %1154 = vmatprep.subr.bf16.mxu0 0
          %1155 = vmatpush2.bf16.msra.mxu0 0
          %1156 = vmatprep.subr.bf16.mxu0 0
          %1157 = vmatpush2.bf16.msra.mxu0 0
          %1158 = vmatprep.mubr.bf16.mxu0 0
          %1159 = vmatmul.mubr.bf16.gmra.mxu0 %v727
          %v1160 = vpop.f32.mrf.mxu0
          %v1161 = vadd.f32 %v1048, %v1160
          %v1162 = vpop.f32.mrf.mxu0
          %v1163 = vadd.f32 %v1050, %v1162
          %v1164 = vpop.f32.mrf.mxu0
          %v1165 = vadd.f32 %v1052, %v1164
          %v1166 = vpop.f32.mrf.mxu0
          %v1167 = vadd.f32 %v1054, %v1166
          %1168 = vmatprep.mubr.bf16.mxu0 0
          %1169 = vmatmul.mubr.bf16.gmra.mxu0 %v730
          %v1170 = vpop.f32.mrf.mxu0
          %v1171 = vadd.f32 %v1058, %v1170
          %v1172 = vpop.f32.mrf.mxu0
          %v1173 = vadd.f32 %v1060, %v1172
          %v1174 = vpop.f32.mrf.mxu0
          %v1175 = vadd.f32 %v1062, %v1174
          %v1176 = vpop.f32.mrf.mxu0
          %v1177 = vadd.f32 %v1064, %v1176
          %1178 = vmatprep.mubr.bf16.mxu0 0
          %1179 = vmatmul.mubr.bf16.gmra.mxu0 %v733
          %v1180 = vpop.f32.mrf.mxu0
          %v1181 = vadd.f32 %v1068, %v1180
          %v1182 = vpop.f32.mrf.mxu0
          %v1183 = vadd.f32 %v1070, %v1182
          %v1184 = vpop.f32.mrf.mxu0
          %v1185 = vadd.f32 %v1072, %v1184
          %v1186 = vpop.f32.mrf.mxu0
          %v1187 = vadd.f32 %v1074, %v1186
          %1188 = vmatprep.mubr.bf16.mxu0 0
          %1189 = vmatmul.mubr.bf16.gmra.mxu0 %v736
          %v1190 = vpop.f32.mrf.mxu0
          %v1191 = vadd.f32 %v1078, %v1190
          %v1192 = vpop.f32.mrf.mxu0
          %v1193 = vadd.f32 %v1080, %v1192
          %v1194 = vpop.f32.mrf.mxu0
          %v1195 = vadd.f32 %v1082, %v1194
          %v1196 = vpop.f32.mrf.mxu0
          %v1197 = vadd.f32 %v1084, %v1196
          %1198 = vmatprep.mubr.bf16.mxu0 0
          %1199 = vmatmul.mubr.bf16.gmra.mxu0 %v739
          %v1200 = vpop.f32.mrf.mxu0
          %v1201 = vadd.f32 %v1088, %v1200
          %v1202 = vpop.f32.mrf.mxu0
          %v1203 = vadd.f32 %v1090, %v1202
          %v1204 = vpop.f32.mrf.mxu0
          %v1205 = vadd.f32 %v1092, %v1204
          %v1206 = vpop.f32.mrf.mxu0
          %v1207 = vadd.f32 %v1094, %v1206
          %1208 = vmatprep.mubr.bf16.mxu0 0
          %1209 = vmatmul.mubr.bf16.gmra.mxu0 %v742
          %v1210 = vpop.f32.mrf.mxu0
          %v1211 = vadd.f32 %v1098, %v1210
          %v1212 = vpop.f32.mrf.mxu0
          %v1213 = vadd.f32 %v1100, %v1212
          %v1214 = vpop.f32.mrf.mxu0
          %v1215 = vadd.f32 %v1102, %v1214
          %v1216 = vpop.f32.mrf.mxu0
          %v1217 = vadd.f32 %v1104, %v1216
          %1218 = vmatprep.mubr.bf16.mxu0 0
          %1219 = vmatmul.mubr.bf16.gmra.mxu0 %v745
          %v1220 = vpop.f32.mrf.mxu0
          %v1221 = vadd.f32 %v1108, %v1220
          %v1222 = vpop.f32.mrf.mxu0
          %v1223 = vadd.f32 %v1110, %v1222
          %v1224 = vpop.f32.mrf.mxu0
          %v1225 = vadd.f32 %v1112, %v1224
          %v1226 = vpop.f32.mrf.mxu0
          %v1227 = vadd.f32 %v1114, %v1226
          %1228 = vmatprep.mubr.bf16.mxu0 0
          %1229 = vmatmul.mubr.bf16.gmra.mxu0 %v748
          %v1230 = vpop.f32.mrf.mxu0
          %v1231 = vadd.f32 %v1118, %v1230
          %v1232 = vpop.f32.mrf.mxu0
          %v1233 = vadd.f32 %v1120, %v1232
          %v1234 = vpop.f32.mrf.mxu0
          %v1235 = vadd.f32 %v1122, %v1234
          %v1236 = vpop.f32.mrf.mxu0
          %v1237 = vadd.f32 %v1124, %v1236
          %1238 = vdwg.mxu0
          %v1239 = vmax.f32 %v1161, 0.0
          %v1240 = vmax.f32 %v1163, 0.0
          %v1241 = vmax.f32 %v1165, 0.0
          %v1242 = vmax.f32 %v1167, 0.0
          %v1243 = vmax.f32 %v1171, 0.0
          %v1244 = vmax.f32 %v1173, 0.0
          %v1245 = vmax.f32 %v1175, 0.0
          %v1246 = vmax.f32 %v1177, 0.0
          %v1247 = vmax.f32 %v1181, 0.0
          %v1248 = vmax.f32 %v1183, 0.0
          %v1249 = vmax.f32 %v1185, 0.0
          %v1250 = vmax.f32 %v1187, 0.0
          %v1251 = vmax.f32 %v1191, 0.0
          %v1252 = vmax.f32 %v1193, 0.0
          %v1253 = vmax.f32 %v1195, 0.0
          %v1254 = vmax.f32 %v1197, 0.0
          %v1255 = vmax.f32 %v1201, 0.0
          %v1256 = vmax.f32 %v1203, 0.0
          %v1257 = vmax.f32 %v1205, 0.0
          %v1258 = vmax.f32 %v1207, 0.0
          %v1259 = vmax.f32 %v1211, 0.0
          %v1260 = vmax.f32 %v1213, 0.0
          %v1261 = vmax.f32 %v1215, 0.0
          %v1262 = vmax.f32 %v1217, 0.0
          %v1263 = vmax.f32 %v1221, 0.0
          %v1264 = vmax.f32 %v1223, 0.0
          %v1265 = vmax.f32 %v1225, 0.0
          %v1266 = vmax.f32 %v1227, 0.0
          %v1267 = vmax.f32 %v1231, 0.0
          %v1268 = vmax.f32 %v1233, 0.0
          %v1269 = vmax.f32 %v1235, 0.0
          %v1270 = vmax.f32 %v1237, 0.0
          %v1271 = vpack.c.bf16 %v1241, %v1239
          %v1272 = vpack.c.bf16 %v1242, %v1240
          %v1273 = vpack.c.bf16 %v1245, %v1243
          %v1274 = vpack.c.bf16 %v1246, %v1244
          %v1275 = vpack.c.bf16 %v1249, %v1247
          %v1276 = vpack.c.bf16 %v1250, %v1248
          %v1277 = vpack.c.bf16 %v1253, %v1251
          %v1278 = vpack.c.bf16 %v1254, %v1252
          %v1279 = vpack.c.bf16 %v1257, %v1255
          %v1280 = vpack.c.bf16 %v1258, %v1256
          %v1281 = vpack.c.bf16 %v1261, %v1259
          %v1282 = vpack.c.bf16 %v1262, %v1260
          %v1283 = vpack.c.bf16 %v1265, %v1263
          %v1284 = vpack.c.bf16 %v1266, %v1264
          %v1285 = vpack.c.bf16 %v1269, %v1267
          %v1286 = vpack.c.bf16 %v1270, %v1268
          %v1287 = vld [vmem:[%s3] sm:$0xff]
          %v1288 = vld [vmem:[%s3 + $0x8] sm:$0xff]
          %v1289 = vld [vmem:[%s3 + $0x10] sm:$0xff]
          %v1290 = vld [vmem:[%s3 + $0x18] sm:$0xff]
          %v1291 = vld [vmem:[%s3 + $0x20] sm:$0xff]
          %v1292 = vld [vmem:[%s3 + $0x28] sm:$0xff]
          %v1293 = vld [vmem:[%s3 + $0x30] sm:$0xff]
          %v1294 = vld [vmem:[%s3 + $0x38] sm:$0xff]
          %v1295 = vld [vmem:[%s3 + $0x40] sm:$0xff]
          %v1296 = vld [vmem:[%s3 + $0x48] sm:$0xff]
          %v1297 = vld [vmem:[%s3 + $0x50] sm:$0xff]
          %v1298 = vld [vmem:[%s3 + $0x58] sm:$0xff]
          %v1299 = vld [vmem:[%s3 + $0x60] sm:$0xff]
          %v1300 = vld [vmem:[%s3 + $0x68] sm:$0xff]
          %v1301 = vld [vmem:[%s3 + $0x70] sm:$0xff]
          %v1302 = vld [vmem:[%s3 + $0x78] sm:$0xff]
          %v1303 = vld [vmem:[%s3 + $0x80] sm:$0xff]
          %v1304 = vld [vmem:[%s3 + $0x88] sm:$0xff]
          %v1305 = vld [vmem:[%s3 + $0x90] sm:$0xff]
          %v1306 = vld [vmem:[%s3 + $0x98] sm:$0xff]
          %v1307 = vld [vmem:[%s3 + $0xa0] sm:$0xff]
          %v1308 = vld [vmem:[%s3 + $0xa8] sm:$0xff]
          %v1309 = vld [vmem:[%s3 + $0xb0] sm:$0xff]
          %v1310 = vld [vmem:[%s3 + $0xb8] sm:$0xff]
          %v1311 = vld [vmem:[%s3 + $0xc0] sm:$0xff]
          %v1312 = vld [vmem:[%s3 + $0xc8] sm:$0xff]
          %v1313 = vld [vmem:[%s3 + $0xd0] sm:$0xff]
          %v1314 = vld [vmem:[%s3 + $0xd8] sm:$0xff]
          %v1315 = vld [vmem:[%s3 + $0xe0] sm:$0xff]
          %v1316 = vld [vmem:[%s3 + $0xe8] sm:$0xff]
          %v1317 = vld [vmem:[%s3 + $0xf0] sm:$0xff]
          %v1318 = vld [vmem:[%s3 + $0xf8] sm:$0xff]
          %v1319 = vld [vmem:[%s4] sm:$0x3]
          %v1321 = vlaneseq
          %v1322 = vshrl.u32 %v1321, 7
          %v1323 = vsub.s32 0, %v1322
          %v1324 = vrot.slane %v1319, %v1323
          %v1325 = vlaneseq
          %v1326 = vshrl.u32 %v1325, 7
          %v1327 = vsub.s32 1, %v1326
          %v1328 = vrot.slane %v1319, %v1327
          %v1363 = vunpack.c.l.b16 %v1287
          %v1364 = vunpack.c.h.b16 %v1287
          %v1365 = vunpack.c.l.b16 %v1288
          %v1366 = vunpack.c.h.b16 %v1288
          %v1367 = vunpack.c.l.b16 %v1289
          %v1368 = vunpack.c.h.b16 %v1289
          %v1369 = vunpack.c.l.b16 %v1290
          %v1370 = vunpack.c.h.b16 %v1290
          %v1371 = vunpack.c.l.b16 %v1291
          %v1372 = vunpack.c.h.b16 %v1291
          %v1373 = vunpack.c.l.b16 %v1292
          %v1374 = vunpack.c.h.b16 %v1292
          %v1375 = vunpack.c.l.b16 %v1293
          %v1376 = vunpack.c.h.b16 %v1293
          %v1377 = vunpack.c.l.b16 %v1294
          %v1378 = vunpack.c.h.b16 %v1294
          %v1379 = vunpack.c.l.b16 %v1295
          %v1380 = vunpack.c.h.b16 %v1295
          %v1381 = vunpack.c.l.b16 %v1296
          %v1382 = vunpack.c.h.b16 %v1296
          %v1383 = vunpack.c.l.b16 %v1297
          %v1384 = vunpack.c.h.b16 %v1297
          %v1385 = vunpack.c.l.b16 %v1298
          %v1386 = vunpack.c.h.b16 %v1298
          %v1387 = vunpack.c.l.b16 %v1299
          %v1388 = vunpack.c.h.b16 %v1299
          %v1389 = vunpack.c.l.b16 %v1300
          %v1390 = vunpack.c.h.b16 %v1300
          %v1391 = vunpack.c.l.b16 %v1301
          %v1392 = vunpack.c.h.b16 %v1301
          %v1393 = vunpack.c.l.b16 %v1302
          %v1394 = vunpack.c.h.b16 %v1302
          %v1395 = vunpack.c.l.b16 %v1303
          %v1396 = vunpack.c.h.b16 %v1303
          %v1397 = vunpack.c.l.b16 %v1304
          %v1398 = vunpack.c.h.b16 %v1304
          %v1399 = vunpack.c.l.b16 %v1305
          %v1400 = vunpack.c.h.b16 %v1305
          %v1401 = vunpack.c.l.b16 %v1306
          %v1402 = vunpack.c.h.b16 %v1306
          %v1403 = vunpack.c.l.b16 %v1307
          %v1404 = vunpack.c.h.b16 %v1307
          %v1405 = vunpack.c.l.b16 %v1308
          %v1406 = vunpack.c.h.b16 %v1308
          %v1407 = vunpack.c.l.b16 %v1309
          %v1408 = vunpack.c.h.b16 %v1309
          %v1409 = vunpack.c.l.b16 %v1310
          %v1410 = vunpack.c.h.b16 %v1310
          %v1411 = vunpack.c.l.b16 %v1311
          %v1412 = vunpack.c.h.b16 %v1311
          %v1413 = vunpack.c.l.b16 %v1312
          %v1414 = vunpack.c.h.b16 %v1312
          %v1415 = vunpack.c.l.b16 %v1313
          %v1416 = vunpack.c.h.b16 %v1313
          %v1417 = vunpack.c.l.b16 %v1314
          %v1418 = vunpack.c.h.b16 %v1314
          %v1419 = vunpack.c.l.b16 %v1315
          %v1420 = vunpack.c.h.b16 %v1315
          %v1421 = vunpack.c.l.b16 %v1316
          %v1422 = vunpack.c.h.b16 %v1316
          %v1423 = vunpack.c.l.b16 %v1317
          %v1424 = vunpack.c.h.b16 %v1317
          %v1425 = vunpack.c.l.b16 %v1318
          %v1426 = vunpack.c.h.b16 %v1318
          %v1427 = vpack.c.b16 %v1365, %v1363
          %v1428 = vpack.c.b16 %v1366, %v1364
          %v1429 = vpack.c.b16 %v1369, %v1367
          %v1430 = vpack.c.b16 %v1370, %v1368
          %v1431 = vpack.c.b16 %v1373, %v1371
          %v1432 = vpack.c.b16 %v1374, %v1372
          %v1433 = vpack.c.b16 %v1377, %v1375
          %v1434 = vpack.c.b16 %v1378, %v1376
          %v1435 = vpack.c.b16 %v1381, %v1379
          %v1436 = vpack.c.b16 %v1382, %v1380
          %v1437 = vpack.c.b16 %v1385, %v1383
          %v1438 = vpack.c.b16 %v1386, %v1384
          %v1439 = vpack.c.b16 %v1389, %v1387
          %v1440 = vpack.c.b16 %v1390, %v1388
          %v1441 = vpack.c.b16 %v1393, %v1391
          %v1442 = vpack.c.b16 %v1394, %v1392
          %v1443 = vpack.c.b16 %v1397, %v1395
          %v1444 = vpack.c.b16 %v1398, %v1396
          %v1445 = vpack.c.b16 %v1401, %v1399
          %v1446 = vpack.c.b16 %v1402, %v1400
          %v1447 = vpack.c.b16 %v1405, %v1403
          %v1448 = vpack.c.b16 %v1406, %v1404
          %v1449 = vpack.c.b16 %v1409, %v1407
          %v1450 = vpack.c.b16 %v1410, %v1408
          %v1451 = vpack.c.b16 %v1413, %v1411
          %v1452 = vpack.c.b16 %v1414, %v1412
          %v1453 = vpack.c.b16 %v1417, %v1415
          %v1454 = vpack.c.b16 %v1418, %v1416
          %v1455 = vpack.c.b16 %v1421, %v1419
          %v1456 = vpack.c.b16 %v1422, %v1420
          %v1457 = vpack.c.b16 %v1425, %v1423
          %v1458 = vpack.c.b16 %v1426, %v1424
          %1491 = vmatprep.subr.bf16.mxu0 %v1442
          %1492 = vmatpush1.bf16.msra.mxu0 %v1441
          %1493 = vmatprep.subr.bf16.mxu0 %v1440
          %1494 = vmatpush1.bf16.msra.mxu0 %v1439
          %1495 = vmatprep.subr.bf16.mxu0 %v1438
          %1496 = vmatpush1.bf16.msra.mxu0 %v1437
          %1497 = vmatprep.subr.bf16.mxu0 %v1436
          %1498 = vmatpush1.bf16.msra.mxu0 %v1435
          %1499 = vmatprep.subr.bf16.mxu0 %v1434
          %1500 = vmatpush1.bf16.msra.mxu0 %v1433
          %1501 = vmatprep.subr.bf16.mxu0 %v1432
          %1502 = vmatpush1.bf16.msra.mxu0 %v1431
          %1503 = vmatprep.subr.bf16.mxu0 %v1430
          %1504 = vmatpush1.bf16.msra.mxu0 %v1429
          %1505 = vmatprep.subr.bf16.mxu0 %v1428
          %1506 = vmatpush1.bf16.msra.mxu0 %v1427
          %1507 = vmatprep.subr.bf16.mxu0 %v1458
          %1508 = vmatpush2.bf16.msra.mxu0 %v1457
          %1509 = vmatprep.subr.bf16.mxu0 %v1456
          %1510 = vmatpush2.bf16.msra.mxu0 %v1455
          %1511 = vmatprep.subr.bf16.mxu0 %v1454
          %1512 = vmatpush2.bf16.msra.mxu0 %v1453
          %1513 = vmatprep.subr.bf16.mxu0 %v1452
          %1514 = vmatpush2.bf16.msra.mxu0 %v1451
          %1515 = vmatprep.subr.bf16.mxu0 %v1450
          %1516 = vmatpush2.bf16.msra.mxu0 %v1449
          %1517 = vmatprep.subr.bf16.mxu0 %v1448
          %1518 = vmatpush2.bf16.msra.mxu0 %v1447
          %1519 = vmatprep.subr.bf16.mxu0 %v1446
          %1520 = vmatpush2.bf16.msra.mxu0 %v1445
          %1521 = vmatprep.subr.bf16.mxu0 %v1444
          %1522 = vmatpush2.bf16.msra.mxu0 %v1443
          %1523 = vmatprep.mubr.bf16.mxu0 %v1272
          %1524 = vmatmul.mubr.bf16.gmra.mxu0 %v1271
          %v1525 = vpop.f32.mrf.mxu0
          %v1526 = vadd.f32 %v1324, %v1525
          %v1527 = vpop.f32.mrf.mxu0
          %v1528 = vadd.f32 %v1328, %v1527
          %v1529 = vpop.f32.mrf.mxu0
          %v1530 = vadd.f32 %v1324, %v1529
          %v1531 = vpop.f32.mrf.mxu0
          %v1532 = vadd.f32 %v1328, %v1531
          %1533 = vmatprep.mubr.bf16.mxu0 %v1274
          %1534 = vmatmul.mubr.bf16.gmra.mxu0 %v1273
          %v1535 = vpop.f32.mrf.mxu0
          %v1536 = vadd.f32 %v1324, %v1535
          %v1537 = vpop.f32.mrf.mxu0
          %v1538 = vadd.f32 %v1328, %v1537
          %v1539 = vpop.f32.mrf.mxu0
          %v1540 = vadd.f32 %v1324, %v1539
          %v1541 = vpop.f32.mrf.mxu0
          %v1542 = vadd.f32 %v1328, %v1541
          %1543 = vmatprep.mubr.bf16.mxu0 %v1276
          %1544 = vmatmul.mubr.bf16.gmra.mxu0 %v1275
          %v1545 = vpop.f32.mrf.mxu0
          %v1546 = vadd.f32 %v1324, %v1545
          %v1547 = vpop.f32.mrf.mxu0
          %v1548 = vadd.f32 %v1328, %v1547
          %v1549 = vpop.f32.mrf.mxu0
          %v1550 = vadd.f32 %v1324, %v1549
          %v1551 = vpop.f32.mrf.mxu0
          %v1552 = vadd.f32 %v1328, %v1551
          %1553 = vmatprep.mubr.bf16.mxu0 %v1278
          %1554 = vmatmul.mubr.bf16.gmra.mxu0 %v1277
          %v1555 = vpop.f32.mrf.mxu0
          %v1556 = vadd.f32 %v1324, %v1555
          %v1557 = vpop.f32.mrf.mxu0
          %v1558 = vadd.f32 %v1328, %v1557
          %v1559 = vpop.f32.mrf.mxu0
          %v1560 = vadd.f32 %v1324, %v1559
          %v1561 = vpop.f32.mrf.mxu0
          %v1562 = vadd.f32 %v1328, %v1561
          %1563 = vmatprep.mubr.bf16.mxu0 %v1280
          %1564 = vmatmul.mubr.bf16.gmra.mxu0 %v1279
          %v1565 = vpop.f32.mrf.mxu0
          %v1566 = vadd.f32 %v1324, %v1565
          %v1567 = vpop.f32.mrf.mxu0
          %v1568 = vadd.f32 %v1328, %v1567
          %v1569 = vpop.f32.mrf.mxu0
          %v1570 = vadd.f32 %v1324, %v1569
          %v1571 = vpop.f32.mrf.mxu0
          %v1572 = vadd.f32 %v1328, %v1571
          %1573 = vmatprep.mubr.bf16.mxu0 %v1282
          %1574 = vmatmul.mubr.bf16.gmra.mxu0 %v1281
          %v1575 = vpop.f32.mrf.mxu0
          %v1576 = vadd.f32 %v1324, %v1575
          %v1577 = vpop.f32.mrf.mxu0
          %v1578 = vadd.f32 %v1328, %v1577
          %v1579 = vpop.f32.mrf.mxu0
          %v1580 = vadd.f32 %v1324, %v1579
          %v1581 = vpop.f32.mrf.mxu0
          %v1582 = vadd.f32 %v1328, %v1581
          %1583 = vmatprep.mubr.bf16.mxu0 %v1284
          %1584 = vmatmul.mubr.bf16.gmra.mxu0 %v1283
          %v1585 = vpop.f32.mrf.mxu0
          %v1586 = vadd.f32 %v1324, %v1585
          %v1587 = vpop.f32.mrf.mxu0
          %v1588 = vadd.f32 %v1328, %v1587
          %v1589 = vpop.f32.mrf.mxu0
          %v1590 = vadd.f32 %v1324, %v1589
          %v1591 = vpop.f32.mrf.mxu0
          %v1592 = vadd.f32 %v1328, %v1591
          %1593 = vmatprep.mubr.bf16.mxu0 %v1286
          %1594 = vmatmul.mubr.bf16.gmra.mxu0 %v1285
          %v1595 = vpop.f32.mrf.mxu0
          %v1596 = vadd.f32 %v1324, %v1595
          %v1597 = vpop.f32.mrf.mxu0
          %v1598 = vadd.f32 %v1328, %v1597
          %v1599 = vpop.f32.mrf.mxu0
          %v1600 = vadd.f32 %v1324, %v1599
          %v1601 = vpop.f32.mrf.mxu0
          %v1602 = vadd.f32 %v1328, %v1601
          %1603 = vdwg.mxu0
          %v1604 = vmax.f32 %v1526, 0.0
          %v1605 = vmax.f32 %v1528, 0.0
          %v1606 = vmax.f32 %v1530, 0.0
          %v1607 = vmax.f32 %v1532, 0.0
          %v1608 = vmax.f32 %v1536, 0.0
          %v1609 = vmax.f32 %v1538, 0.0
          %v1610 = vmax.f32 %v1540, 0.0
          %v1611 = vmax.f32 %v1542, 0.0
          %v1612 = vmax.f32 %v1546, 0.0
          %v1613 = vmax.f32 %v1548, 0.0
          %v1614 = vmax.f32 %v1550, 0.0
          %v1615 = vmax.f32 %v1552, 0.0
          %v1616 = vmax.f32 %v1556, 0.0
          %v1617 = vmax.f32 %v1558, 0.0
          %v1618 = vmax.f32 %v1560, 0.0
          %v1619 = vmax.f32 %v1562, 0.0
          %v1620 = vmax.f32 %v1566, 0.0
          %v1621 = vmax.f32 %v1568, 0.0
          %v1622 = vmax.f32 %v1570, 0.0
          %v1623 = vmax.f32 %v1572, 0.0
          %v1624 = vmax.f32 %v1576, 0.0
          %v1625 = vmax.f32 %v1578, 0.0
          %v1626 = vmax.f32 %v1580, 0.0
          %v1627 = vmax.f32 %v1582, 0.0
          %v1628 = vmax.f32 %v1586, 0.0
          %v1629 = vmax.f32 %v1588, 0.0
          %v1630 = vmax.f32 %v1590, 0.0
          %v1631 = vmax.f32 %v1592, 0.0
          %v1632 = vmax.f32 %v1596, 0.0
          %v1633 = vmax.f32 %v1598, 0.0
          %v1634 = vmax.f32 %v1600, 0.0
          %v1635 = vmax.f32 %v1602, 0.0
          %v1636 = vpack.c.bf16 %v1606, %v1604
          %v1637 = vpack.c.bf16 %v1607, %v1605
          %v1638 = vpack.c.bf16 %v1610, %v1608
          %v1639 = vpack.c.bf16 %v1611, %v1609
          %v1640 = vpack.c.bf16 %v1614, %v1612
          %v1641 = vpack.c.bf16 %v1615, %v1613
          %v1642 = vpack.c.bf16 %v1618, %v1616
          %v1643 = vpack.c.bf16 %v1619, %v1617
          %v1644 = vpack.c.bf16 %v1622, %v1620
          %v1645 = vpack.c.bf16 %v1623, %v1621
          %v1646 = vpack.c.bf16 %v1626, %v1624
          %v1647 = vpack.c.bf16 %v1627, %v1625
          %v1648 = vpack.c.bf16 %v1630, %v1628
          %v1649 = vpack.c.bf16 %v1631, %v1629
          %v1650 = vpack.c.bf16 %v1634, %v1632
          %v1651 = vpack.c.bf16 %v1635, %v1633
          %v1652 = vld [vmem:[%s5] sm:$0xff]
          %v1653 = vld [vmem:[%s5 + $0x8] sm:$0xff]
          %v1654 = vld [vmem:[%s5 + $0x10] sm:$0xff]
          %v1655 = vld [vmem:[%s5 + $0x18] sm:$0xff]
          %v1656 = vld [vmem:[%s5 + $0x20] sm:$0xff]
          %v1657 = vld [vmem:[%s5 + $0x28] sm:$0xff]
          %v1658 = vld [vmem:[%s5 + $0x30] sm:$0xff]
          %v1659 = vld [vmem:[%s5 + $0x38] sm:$0xff]
          %v1660 = vld [vmem:[%s5 + $0x40] sm:$0xff]
          %v1661 = vld [vmem:[%s5 + $0x48] sm:$0xff]
          %v1662 = vld [vmem:[%s5 + $0x50] sm:$0xff]
          %v1663 = vld [vmem:[%s5 + $0x58] sm:$0xff]
          %v1664 = vld [vmem:[%s5 + $0x60] sm:$0xff]
          %v1665 = vld [vmem:[%s5 + $0x68] sm:$0xff]
          %v1666 = vld [vmem:[%s5 + $0x70] sm:$0xff]
          %v1667 = vld [vmem:[%s5 + $0x78] sm:$0xff]
          %v1668 = vld [vmem:[%s5 + $0x80] sm:$0xff]
          %v1669 = vld [vmem:[%s5 + $0x88] sm:$0xff]
          %v1670 = vld [vmem:[%s5 + $0x90] sm:$0xff]
          %v1671 = vld [vmem:[%s5 + $0x98] sm:$0xff]
          %v1672 = vld [vmem:[%s5 + $0xa0] sm:$0xff]
          %v1673 = vld [vmem:[%s5 + $0xa8] sm:$0xff]
          %v1674 = vld [vmem:[%s5 + $0xb0] sm:$0xff]
          %v1675 = vld [vmem:[%s5 + $0xb8] sm:$0xff]
          %v1676 = vld [vmem:[%s5 + $0xc0] sm:$0xff]
          %v1677 = vld [vmem:[%s5 + $0xc8] sm:$0xff]
          %v1678 = vld [vmem:[%s5 + $0xd0] sm:$0xff]
          %v1679 = vld [vmem:[%s5 + $0xd8] sm:$0xff]
          %v1680 = vld [vmem:[%s5 + $0xe0] sm:$0xff]
          %v1681 = vld [vmem:[%s5 + $0xe8] sm:$0xff]
          %v1682 = vld [vmem:[%s5 + $0xf0] sm:$0xff]
          %v1683 = vld [vmem:[%s5 + $0xf8] sm:$0xff]
          %v1684 = vld [vmem:[%s6] sm:$0x3]
          %v1686 = vlaneseq
          %v1687 = vshrl.u32 %v1686, 7
          %v1688 = vsub.s32 0, %v1687
          %v1689 = vrot.slane %v1684, %v1688
          %v1690 = vlaneseq
          %v1691 = vshrl.u32 %v1690, 7
          %v1692 = vsub.s32 1, %v1691
          %v1693 = vrot.slane %v1684, %v1692
          %v1728 = vunpack.c.l.b16 %v1652
          %v1729 = vunpack.c.h.b16 %v1652
          %v1730 = vunpack.c.l.b16 %v1653
          %v1731 = vunpack.c.h.b16 %v1653
          %v1732 = vunpack.c.l.b16 %v1654
          %v1733 = vunpack.c.h.b16 %v1654
          %v1734 = vunpack.c.l.b16 %v1655
          %v1735 = vunpack.c.h.b16 %v1655
          %v1736 = vunpack.c.l.b16 %v1656
          %v1737 = vunpack.c.h.b16 %v1656
          %v1738 = vunpack.c.l.b16 %v1657
          %v1739 = vunpack.c.h.b16 %v1657
          %v1740 = vunpack.c.l.b16 %v1658
          %v1741 = vunpack.c.h.b16 %v1658
          %v1742 = vunpack.c.l.b16 %v1659
          %v1743 = vunpack.c.h.b16 %v1659
          %v1744 = vunpack.c.l.b16 %v1660
          %v1745 = vunpack.c.h.b16 %v1660
          %v1746 = vunpack.c.l.b16 %v1661
          %v1747 = vunpack.c.h.b16 %v1661
          %v1748 = vunpack.c.l.b16 %v1662
          %v1749 = vunpack.c.h.b16 %v1662
          %v1750 = vunpack.c.l.b16 %v1663
          %v1751 = vunpack.c.h.b16 %v1663
          %v1752 = vunpack.c.l.b16 %v1664
          %v1753 = vunpack.c.h.b16 %v1664
          %v1754 = vunpack.c.l.b16 %v1665
          %v1755 = vunpack.c.h.b16 %v1665
          %v1756 = vunpack.c.l.b16 %v1666
          %v1757 = vunpack.c.h.b16 %v1666
          %v1758 = vunpack.c.l.b16 %v1667
          %v1759 = vunpack.c.h.b16 %v1667
          %v1760 = vunpack.c.l.b16 %v1668
          %v1761 = vunpack.c.h.b16 %v1668
          %v1762 = vunpack.c.l.b16 %v1669
          %v1763 = vunpack.c.h.b16 %v1669
          %v1764 = vunpack.c.l.b16 %v1670
          %v1765 = vunpack.c.h.b16 %v1670
          %v1766 = vunpack.c.l.b16 %v1671
          %v1767 = vunpack.c.h.b16 %v1671
          %v1768 = vunpack.c.l.b16 %v1672
          %v1769 = vunpack.c.h.b16 %v1672
          %v1770 = vunpack.c.l.b16 %v1673
          %v1771 = vunpack.c.h.b16 %v1673
          %v1772 = vunpack.c.l.b16 %v1674
          %v1773 = vunpack.c.h.b16 %v1674
          %v1774 = vunpack.c.l.b16 %v1675
          %v1775 = vunpack.c.h.b16 %v1675
          %v1776 = vunpack.c.l.b16 %v1676
          %v1777 = vunpack.c.h.b16 %v1676
          %v1778 = vunpack.c.l.b16 %v1677
          %v1779 = vunpack.c.h.b16 %v1677
          %v1780 = vunpack.c.l.b16 %v1678
          %v1781 = vunpack.c.h.b16 %v1678
          %v1782 = vunpack.c.l.b16 %v1679
          %v1783 = vunpack.c.h.b16 %v1679
          %v1784 = vunpack.c.l.b16 %v1680
          %v1785 = vunpack.c.h.b16 %v1680
          %v1786 = vunpack.c.l.b16 %v1681
          %v1787 = vunpack.c.h.b16 %v1681
          %v1788 = vunpack.c.l.b16 %v1682
          %v1789 = vunpack.c.h.b16 %v1682
          %v1790 = vunpack.c.l.b16 %v1683
          %v1791 = vunpack.c.h.b16 %v1683
          %v1792 = vpack.c.b16 %v1730, %v1728
          %v1793 = vpack.c.b16 %v1731, %v1729
          %v1794 = vpack.c.b16 %v1734, %v1732
          %v1795 = vpack.c.b16 %v1735, %v1733
          %v1796 = vpack.c.b16 %v1738, %v1736
          %v1797 = vpack.c.b16 %v1739, %v1737
          %v1798 = vpack.c.b16 %v1742, %v1740
          %v1799 = vpack.c.b16 %v1743, %v1741
          %v1800 = vpack.c.b16 %v1746, %v1744
          %v1801 = vpack.c.b16 %v1747, %v1745
          %v1802 = vpack.c.b16 %v1750, %v1748
          %v1803 = vpack.c.b16 %v1751, %v1749
          %v1804 = vpack.c.b16 %v1754, %v1752
          %v1805 = vpack.c.b16 %v1755, %v1753
          %v1806 = vpack.c.b16 %v1758, %v1756
          %v1807 = vpack.c.b16 %v1759, %v1757
          %v1808 = vpack.c.b16 %v1762, %v1760
          %v1809 = vpack.c.b16 %v1763, %v1761
          %v1810 = vpack.c.b16 %v1766, %v1764
          %v1811 = vpack.c.b16 %v1767, %v1765
          %v1812 = vpack.c.b16 %v1770, %v1768
          %v1813 = vpack.c.b16 %v1771, %v1769
          %v1814 = vpack.c.b16 %v1774, %v1772
          %v1815 = vpack.c.b16 %v1775, %v1773
          %v1816 = vpack.c.b16 %v1778, %v1776
          %v1817 = vpack.c.b16 %v1779, %v1777
          %v1818 = vpack.c.b16 %v1782, %v1780
          %v1819 = vpack.c.b16 %v1783, %v1781
          %v1820 = vpack.c.b16 %v1786, %v1784
          %v1821 = vpack.c.b16 %v1787, %v1785
          %v1822 = vpack.c.b16 %v1790, %v1788
          %v1823 = vpack.c.b16 %v1791, %v1789
          %1856 = vmatprep.subr.bf16.mxu0 %v1807
          %1857 = vmatpush1.bf16.msra.mxu0 %v1806
          %1858 = vmatprep.subr.bf16.mxu0 %v1805
          %1859 = vmatpush1.bf16.msra.mxu0 %v1804
          %1860 = vmatprep.subr.bf16.mxu0 %v1803
          %1861 = vmatpush1.bf16.msra.mxu0 %v1802
          %1862 = vmatprep.subr.bf16.mxu0 %v1801
          %1863 = vmatpush1.bf16.msra.mxu0 %v1800
          %1864 = vmatprep.subr.bf16.mxu0 %v1799
          %1865 = vmatpush1.bf16.msra.mxu0 %v1798
          %1866 = vmatprep.subr.bf16.mxu0 %v1797
          %1867 = vmatpush1.bf16.msra.mxu0 %v1796
          %1868 = vmatprep.subr.bf16.mxu0 %v1795
          %1869 = vmatpush1.bf16.msra.mxu0 %v1794
          %1870 = vmatprep.subr.bf16.mxu0 %v1793
          %1871 = vmatpush1.bf16.msra.mxu0 %v1792
          %1872 = vmatprep.subr.bf16.mxu0 %v1823
          %1873 = vmatpush2.bf16.msra.mxu0 %v1822
          %1874 = vmatprep.subr.bf16.mxu0 %v1821
          %1875 = vmatpush2.bf16.msra.mxu0 %v1820
          %1876 = vmatprep.subr.bf16.mxu0 %v1819
          %1877 = vmatpush2.bf16.msra.mxu0 %v1818
          %1878 = vmatprep.subr.bf16.mxu0 %v1817
          %1879 = vmatpush2.bf16.msra.mxu0 %v1816
          %1880 = vmatprep.subr.bf16.mxu0 %v1815
          %1881 = vmatpush2.bf16.msra.mxu0 %v1814
          %1882 = vmatprep.subr.bf16.mxu0 %v1813
          %1883 = vmatpush2.bf16.msra.mxu0 %v1812
          %1884 = vmatprep.subr.bf16.mxu0 %v1811
          %1885 = vmatpush2.bf16.msra.mxu0 %v1810
          %1886 = vmatprep.subr.bf16.mxu0 %v1809
          %1887 = vmatpush2.bf16.msra.mxu0 %v1808
          %1888 = vmatprep.mubr.bf16.mxu0 %v1637
          %1889 = vmatmul.mubr.bf16.gmra.mxu0 %v1636
          %v1890 = vpop.f32.mrf.mxu0
          %v1891 = vadd.f32 %v1689, %v1890
          %v1892 = vpop.f32.mrf.mxu0
          %v1893 = vadd.f32 %v1693, %v1892
          %v1894 = vpop.f32.mrf.mxu0
          %v1895 = vadd.f32 %v1689, %v1894
          %v1896 = vpop.f32.mrf.mxu0
          %v1897 = vadd.f32 %v1693, %v1896
          %1898 = vmatprep.mubr.bf16.mxu0 %v1639
          %1899 = vmatmul.mubr.bf16.gmra.mxu0 %v1638
          %v1900 = vpop.f32.mrf.mxu0
          %v1901 = vadd.f32 %v1689, %v1900
          %v1902 = vpop.f32.mrf.mxu0
          %v1903 = vadd.f32 %v1693, %v1902
          %v1904 = vpop.f32.mrf.mxu0
          %v1905 = vadd.f32 %v1689, %v1904
          %v1906 = vpop.f32.mrf.mxu0
          %v1907 = vadd.f32 %v1693, %v1906
          %1908 = vmatprep.mubr.bf16.mxu0 %v1641
          %1909 = vmatmul.mubr.bf16.gmra.mxu0 %v1640
          %v1910 = vpop.f32.mrf.mxu0
          %v1911 = vadd.f32 %v1689, %v1910
          %v1912 = vpop.f32.mrf.mxu0
          %v1913 = vadd.f32 %v1693, %v1912
          %v1914 = vpop.f32.mrf.mxu0
          %v1915 = vadd.f32 %v1689, %v1914
          %v1916 = vpop.f32.mrf.mxu0
          %v1917 = vadd.f32 %v1693, %v1916
          %1918 = vmatprep.mubr.bf16.mxu0 %v1643
          %1919 = vmatmul.mubr.bf16.gmra.mxu0 %v1642
          %v1920 = vpop.f32.mrf.mxu0
          %v1921 = vadd.f32 %v1689, %v1920
          %v1922 = vpop.f32.mrf.mxu0
          %v1923 = vadd.f32 %v1693, %v1922
          %v1924 = vpop.f32.mrf.mxu0
          %v1925 = vadd.f32 %v1689, %v1924
          %v1926 = vpop.f32.mrf.mxu0
          %v1927 = vadd.f32 %v1693, %v1926
          %1928 = vmatprep.mubr.bf16.mxu0 %v1645
          %1929 = vmatmul.mubr.bf16.gmra.mxu0 %v1644
          %v1930 = vpop.f32.mrf.mxu0
          %v1931 = vadd.f32 %v1689, %v1930
          %v1932 = vpop.f32.mrf.mxu0
          %v1933 = vadd.f32 %v1693, %v1932
          %v1934 = vpop.f32.mrf.mxu0
          %v1935 = vadd.f32 %v1689, %v1934
          %v1936 = vpop.f32.mrf.mxu0
          %v1937 = vadd.f32 %v1693, %v1936
          %1938 = vmatprep.mubr.bf16.mxu0 %v1647
          %1939 = vmatmul.mubr.bf16.gmra.mxu0 %v1646
          %v1940 = vpop.f32.mrf.mxu0
          %v1941 = vadd.f32 %v1689, %v1940
          %v1942 = vpop.f32.mrf.mxu0
          %v1943 = vadd.f32 %v1693, %v1942
          %v1944 = vpop.f32.mrf.mxu0
          %v1945 = vadd.f32 %v1689, %v1944
          %v1946 = vpop.f32.mrf.mxu0
          %v1947 = vadd.f32 %v1693, %v1946
          %1948 = vmatprep.mubr.bf16.mxu0 %v1649
          %1949 = vmatmul.mubr.bf16.gmra.mxu0 %v1648
          %v1950 = vpop.f32.mrf.mxu0
          %v1951 = vadd.f32 %v1689, %v1950
          %v1952 = vpop.f32.mrf.mxu0
          %v1953 = vadd.f32 %v1693, %v1952
          %v1954 = vpop.f32.mrf.mxu0
          %v1955 = vadd.f32 %v1689, %v1954
          %v1956 = vpop.f32.mrf.mxu0
          %v1957 = vadd.f32 %v1693, %v1956
          %1958 = vmatprep.mubr.bf16.mxu0 %v1651
          %1959 = vmatmul.mubr.bf16.gmra.mxu0 %v1650
          %v1960 = vpop.f32.mrf.mxu0
          %v1961 = vadd.f32 %v1689, %v1960
          %v1962 = vpop.f32.mrf.mxu0
          %v1963 = vadd.f32 %v1693, %v1962
          %v1964 = vpop.f32.mrf.mxu0
          %v1965 = vadd.f32 %v1689, %v1964
          %v1966 = vpop.f32.mrf.mxu0
          %v1967 = vadd.f32 %v1693, %v1966
          %1968 = vdwg.mxu0
          %v1969 = vmax.f32 %v1891, 0.0
          %v1970 = vmax.f32 %v1893, 0.0
          %v1971 = vmax.f32 %v1895, 0.0
          %v1972 = vmax.f32 %v1897, 0.0
          %v1973 = vmax.f32 %v1901, 0.0
          %v1974 = vmax.f32 %v1903, 0.0
          %v1975 = vmax.f32 %v1905, 0.0
          %v1976 = vmax.f32 %v1907, 0.0
          %v1977 = vmax.f32 %v1911, 0.0
          %v1978 = vmax.f32 %v1913, 0.0
          %v1979 = vmax.f32 %v1915, 0.0
          %v1980 = vmax.f32 %v1917, 0.0
          %v1981 = vmax.f32 %v1921, 0.0
          %v1982 = vmax.f32 %v1923, 0.0
          %v1983 = vmax.f32 %v1925, 0.0
          %v1984 = vmax.f32 %v1927, 0.0
          %v1985 = vmax.f32 %v1931, 0.0
          %v1986 = vmax.f32 %v1933, 0.0
          %v1987 = vmax.f32 %v1935, 0.0
          %v1988 = vmax.f32 %v1937, 0.0
          %v1989 = vmax.f32 %v1941, 0.0
          %v1990 = vmax.f32 %v1943, 0.0
          %v1991 = vmax.f32 %v1945, 0.0
          %v1992 = vmax.f32 %v1947, 0.0
          %v1993 = vmax.f32 %v1951, 0.0
          %v1994 = vmax.f32 %v1953, 0.0
          %v1995 = vmax.f32 %v1955, 0.0
          %v1996 = vmax.f32 %v1957, 0.0
          %v1997 = vmax.f32 %v1961, 0.0
          %v1998 = vmax.f32 %v1963, 0.0
          %v1999 = vmax.f32 %v1965, 0.0
          %v2000 = vmax.f32 %v1967, 0.0
          %v2001 = vpack.c.bf16 %v1971, %v1969
          %v2002 = vpack.c.bf16 %v1972, %v1970
          %v2003 = vpack.c.bf16 %v1975, %v1973
          %v2004 = vpack.c.bf16 %v1976, %v1974
          %v2005 = vpack.c.bf16 %v1979, %v1977
          %v2006 = vpack.c.bf16 %v1980, %v1978
          %v2007 = vpack.c.bf16 %v1983, %v1981
          %v2008 = vpack.c.bf16 %v1984, %v1982
          %v2009 = vpack.c.bf16 %v1987, %v1985
          %v2010 = vpack.c.bf16 %v1988, %v1986
          %v2011 = vpack.c.bf16 %v1991, %v1989
          %v2012 = vpack.c.bf16 %v1992, %v1990
          %v2013 = vpack.c.bf16 %v1995, %v1993
          %v2014 = vpack.c.bf16 %v1996, %v1994
          %v2015 = vpack.c.bf16 %v1999, %v1997
          %v2016 = vpack.c.bf16 %v2000, %v1998
          %v2033 = vunpack.c.l.b16 %v2001
          %v2034 = vunpack.c.l.b16 %v2002
          %v2035 = vunpack.c.h.b16 %v2001
          %v2036 = vunpack.c.h.b16 %v2002
          %v2037 = vunpack.c.l.b16 %v2003
          %v2038 = vunpack.c.l.b16 %v2004
          %v2039 = vunpack.c.h.b16 %v2003
          %v2040 = vunpack.c.h.b16 %v2004
          %v2041 = vunpack.c.l.b16 %v2005
          %v2042 = vunpack.c.l.b16 %v2006
          %v2043 = vunpack.c.h.b16 %v2005
          %v2044 = vunpack.c.h.b16 %v2006
          %v2045 = vunpack.c.l.b16 %v2007
          %v2046 = vunpack.c.l.b16 %v2008
          %v2047 = vunpack.c.h.b16 %v2007
          %v2048 = vunpack.c.h.b16 %v2008
          %v2049 = vunpack.c.l.b16 %v2009
          %v2050 = vunpack.c.l.b16 %v2010
          %v2051 = vunpack.c.h.b16 %v2009
          %v2052 = vunpack.c.h.b16 %v2010
          %v2053 = vunpack.c.l.b16 %v2011
          %v2054 = vunpack.c.l.b16 %v2012
          %v2055 = vunpack.c.h.b16 %v2011
          %v2056 = vunpack.c.h.b16 %v2012
          %v2057 = vunpack.c.l.b16 %v2013
          %v2058 = vunpack.c.l.b16 %v2014
          %v2059 = vunpack.c.h.b16 %v2013
          %v2060 = vunpack.c.h.b16 %v2014
          %v2061 = vunpack.c.l.b16 %v2015
          %v2062 = vunpack.c.l.b16 %v2016
          %v2063 = vunpack.c.h.b16 %v2015
          %v2064 = vunpack.c.h.b16 %v2016
          %v2065 = vpack.c.b16 %v2034, %v2033
          %v2066 = vpack.c.b16 %v2036, %v2035
          %v2067 = vpack.c.b16 %v2038, %v2037
          %v2068 = vpack.c.b16 %v2040, %v2039
          %v2069 = vpack.c.b16 %v2042, %v2041
          %v2070 = vpack.c.b16 %v2044, %v2043
          %v2071 = vpack.c.b16 %v2046, %v2045
          %v2072 = vpack.c.b16 %v2048, %v2047
          %v2073 = vpack.c.b16 %v2050, %v2049
          %v2074 = vpack.c.b16 %v2052, %v2051
          %v2075 = vpack.c.b16 %v2054, %v2053
          %v2076 = vpack.c.b16 %v2056, %v2055
          %v2077 = vpack.c.b16 %v2058, %v2057
          %v2078 = vpack.c.b16 %v2060, %v2059
          %v2079 = vpack.c.b16 %v2062, %v2061
          %v2080 = vpack.c.b16 %v2064, %v2063
          %2097 = vst [vmem:[#allocation2] sm:$0xff] %v2065
          %2098 = vst [vmem:[#allocation2 + $0x8] sm:$0xff] %v2066
          %2099 = vst [vmem:[#allocation2 + $0x10] sm:$0xff] %v2067
          %2100 = vst [vmem:[#allocation2 + $0x18] sm:$0xff] %v2068
          %2101 = vst [vmem:[#allocation2 + $0x20] sm:$0xff] %v2069
          %2102 = vst [vmem:[#allocation2 + $0x28] sm:$0xff] %v2070
          %2103 = vst [vmem:[#allocation2 + $0x30] sm:$0xff] %v2071
          %2104 = vst [vmem:[#allocation2 + $0x38] sm:$0xff] %v2072
          %2105 = vst [vmem:[#allocation2 + $0x40] sm:$0xff] %v2073
          %2106 = vst [vmem:[#allocation2 + $0x48] sm:$0xff] %v2074
          %2107 = vst [vmem:[#allocation2 + $0x50] sm:$0xff] %v2075
          %2108 = vst [vmem:[#allocation2 + $0x58] sm:$0xff] %v2076
          %2109 = vst [vmem:[#allocation2 + $0x60] sm:$0xff] %v2077
          %2110 = vst [vmem:[#allocation2 + $0x68] sm:$0xff] %v2078
          %2111 = vst [vmem:[#allocation2 + $0x70] sm:$0xff] %v2079
          %2112 = vst [vmem:[#allocation2 + $0x78] sm:$0xff] %v2080
        $region98: #{mlp_forward.1} parent=89 // pred_fallthru
          _
        %v2113 = vld [vmem:[#allocation2] sm:$0xff]
        %v2114 = vld [vmem:[#allocation2 + $0x8] sm:$0xff]
        %v2115 = vld [vmem:[#allocation2 + $0x10] sm:$0xff]
        %v2116 = vld [vmem:[#allocation2 + $0x18] sm:$0xff]
        %v2117 = vld [vmem:[#allocation2 + $0x20] sm:$0xff]
        %v2118 = vld [vmem:[#allocation2 + $0x28] sm:$0xff]
        %v2119 = vld [vmem:[#allocation2 + $0x30] sm:$0xff]
        %v2120 = vld [vmem:[#allocation2 + $0x38] sm:$0xff]
        %v2121 = vld [vmem:[#allocation2 + $0x40] sm:$0xff]
        %v2122 = vld [vmem:[#allocation2 + $0x48] sm:$0xff]
        %v2123 = vld [vmem:[#allocation2 + $0x50] sm:$0xff]
        %v2124 = vld [vmem:[#allocation2 + $0x58] sm:$0xff]
        %v2125 = vld [vmem:[#allocation2 + $0x60] sm:$0xff]
        %v2126 = vld [vmem:[#allocation2 + $0x68] sm:$0xff]
        %v2127 = vld [vmem:[#allocation2 + $0x70] sm:$0xff]
        %v2128 = vld [vmem:[#allocation2 + $0x78] sm:$0xff]
        %v2129 = vld [vmem:[%s491] sm:$0xff]
        %v2130 = vld [vmem:[%s491 + $0x8] sm:$0xff]
        %v2131 = vld [vmem:[%s491 + $0x10] sm:$0xff]
        %v2132 = vld [vmem:[%s491 + $0x18] sm:$0xff]
        %v2133 = vld [vmem:[%s491 + $0x20] sm:$0xff]
        %v2134 = vld [vmem:[%s491 + $0x28] sm:$0xff]
        %v2135 = vld [vmem:[%s491 + $0x30] sm:$0xff]
        %v2136 = vld [vmem:[%s491 + $0x38] sm:$0xff]
        %v2137 = vld [vmem:[%s491 + $0x40] sm:$0xff]
        %v2138 = vld [vmem:[%s491 + $0x48] sm:$0xff]
        %v2139 = vld [vmem:[%s491 + $0x50] sm:$0xff]
        %v2140 = vld [vmem:[%s491 + $0x58] sm:$0xff]
        %v2141 = vld [vmem:[%s491 + $0x60] sm:$0xff]
        %v2142 = vld [vmem:[%s491 + $0x68] sm:$0xff]
        %v2143 = vld [vmem:[%s491 + $0x70] sm:$0xff]
        %v2144 = vld [vmem:[%s491 + $0x78] sm:$0xff]
        %v2145 = vld [vmem:[%s491 + $0x80] sm:$0xff]
        %v2146 = vld [vmem:[%s491 + $0x88] sm:$0xff]
        %v2147 = vld [vmem:[%s491 + $0x90] sm:$0xff]
        %v2148 = vld [vmem:[%s491 + $0x98] sm:$0xff]
        %v2149 = vld [vmem:[%s491 + $0xa0] sm:$0xff]
        %v2150 = vld [vmem:[%s491 + $0xa8] sm:$0xff]
        %v2151 = vld [vmem:[%s491 + $0xb0] sm:$0xff]
        %v2152 = vld [vmem:[%s491 + $0xb8] sm:$0xff]
        %v2153 = vld [vmem:[%s491 + $0xc0] sm:$0xff]
        %v2154 = vld [vmem:[%s491 + $0xc8] sm:$0xff]
        %v2155 = vld [vmem:[%s491 + $0xd0] sm:$0xff]
        %v2156 = vld [vmem:[%s491 + $0xd8] sm:$0xff]
        %v2157 = vld [vmem:[%s491 + $0xe0] sm:$0xff]
        %v2158 = vld [vmem:[%s491 + $0xe8] sm:$0xff]
        %v2159 = vld [vmem:[%s491 + $0xf0] sm:$0xff]
        %v2160 = vld [vmem:[%s491 + $0xf8] sm:$0xff]
        %v2161 = vld [vmem:[%s544] sm:$0x3]
        %v2163 = vlaneseq
        %v2164 = vshrl.u32 %v2163, 7
        %v2165 = vsub.s32 0, %v2164
        %v2166 = vrot.slane %v2161, %v2165
        %v2167 = vlaneseq
        %v2168 = vshrl.u32 %v2167, 7
        %v2169 = vsub.s32 1, %v2168
        %v2170 = vrot.slane %v2161, %v2169
        %v2189 = vunpack.c.l.b16 %v2113
        %v2190 = vunpack.c.h.b16 %v2113
        %v2191 = vunpack.c.l.b16 %v2114
        %v2192 = vunpack.c.h.b16 %v2114
        %v2193 = vunpack.c.l.b16 %v2115
        %v2194 = vunpack.c.h.b16 %v2115
        %v2195 = vunpack.c.l.b16 %v2116
        %v2196 = vunpack.c.h.b16 %v2116
        %v2197 = vunpack.c.l.b16 %v2117
        %v2198 = vunpack.c.h.b16 %v2117
        %v2199 = vunpack.c.l.b16 %v2118
        %v2200 = vunpack.c.h.b16 %v2118
        %v2201 = vunpack.c.l.b16 %v2119
        %v2202 = vunpack.c.h.b16 %v2119
        %v2203 = vunpack.c.l.b16 %v2120
        %v2204 = vunpack.c.h.b16 %v2120
        %v2205 = vunpack.c.l.b16 %v2121
        %v2206 = vunpack.c.h.b16 %v2121
        %v2207 = vunpack.c.l.b16 %v2122
        %v2208 = vunpack.c.h.b16 %v2122
        %v2209 = vunpack.c.l.b16 %v2123
        %v2210 = vunpack.c.h.b16 %v2123
        %v2211 = vunpack.c.l.b16 %v2124
        %v2212 = vunpack.c.h.b16 %v2124
        %v2213 = vunpack.c.l.b16 %v2125
        %v2214 = vunpack.c.h.b16 %v2125
        %v2215 = vunpack.c.l.b16 %v2126
        %v2216 = vunpack.c.h.b16 %v2126
        %v2217 = vunpack.c.l.b16 %v2127
        %v2218 = vunpack.c.h.b16 %v2127
        %v2219 = vunpack.c.l.b16 %v2128
        %v2220 = vunpack.c.h.b16 %v2128
        %v2221 = vpack.c.b16 %v2191, %v2189
        %v2222 = vpack.c.b16 %v2192, %v2190
        %v2223 = vpack.c.b16 %v2195, %v2193
        %v2224 = vpack.c.b16 %v2196, %v2194
        %v2225 = vpack.c.b16 %v2199, %v2197
        %v2226 = vpack.c.b16 %v2200, %v2198
        %v2227 = vpack.c.b16 %v2203, %v2201
        %v2228 = vpack.c.b16 %v2204, %v2202
        %v2229 = vpack.c.b16 %v2207, %v2205
        %v2230 = vpack.c.b16 %v2208, %v2206
        %v2231 = vpack.c.b16 %v2211, %v2209
        %v2232 = vpack.c.b16 %v2212, %v2210
        %v2233 = vpack.c.b16 %v2215, %v2213
        %v2234 = vpack.c.b16 %v2216, %v2214
        %v2235 = vpack.c.b16 %v2219, %v2217
        %v2236 = vpack.c.b16 %v2220, %v2218
        %v2285 = vunpack.c.l.b16 %v2129
        %v2286 = vunpack.c.h.b16 %v2129
        %v2287 = vunpack.c.l.b16 %v2130
        %v2288 = vunpack.c.h.b16 %v2130
        %v2289 = vunpack.c.l.b16 %v2131
        %v2290 = vunpack.c.h.b16 %v2131
        %v2291 = vunpack.c.l.b16 %v2132
        %v2292 = vunpack.c.h.b16 %v2132
        %v2293 = vunpack.c.l.b16 %v2133
        %v2294 = vunpack.c.h.b16 %v2133
        %v2295 = vunpack.c.l.b16 %v2134
        %v2296 = vunpack.c.h.b16 %v2134
        %v2297 = vunpack.c.l.b16 %v2135
        %v2298 = vunpack.c.h.b16 %v2135
        %v2299 = vunpack.c.l.b16 %v2136
        %v2300 = vunpack.c.h.b16 %v2136
        %v2301 = vunpack.c.l.b16 %v2137
        %v2302 = vunpack.c.h.b16 %v2137
        %v2303 = vunpack.c.l.b16 %v2138
        %v2304 = vunpack.c.h.b16 %v2138
        %v2305 = vunpack.c.l.b16 %v2139
        %v2306 = vunpack.c.h.b16 %v2139
        %v2307 = vunpack.c.l.b16 %v2140
        %v2308 = vunpack.c.h.b16 %v2140
        %v2309 = vunpack.c.l.b16 %v2141
        %v2310 = vunpack.c.h.b16 %v2141
        %v2311 = vunpack.c.l.b16 %v2142
        %v2312 = vunpack.c.h.b16 %v2142
        %v2313 = vunpack.c.l.b16 %v2143
        %v2314 = vunpack.c.h.b16 %v2143
        %v2315 = vunpack.c.l.b16 %v2144
        %v2316 = vunpack.c.h.b16 %v2144
        %v2317 = vunpack.c.l.b16 %v2145
        %v2318 = vunpack.c.h.b16 %v2145
        %v2319 = vunpack.c.l.b16 %v2146
        %v2320 = vunpack.c.h.b16 %v2146
        %v2321 = vunpack.c.l.b16 %v2147
        %v2322 = vunpack.c.h.b16 %v2147
        %v2323 = vunpack.c.l.b16 %v2148
        %v2324 = vunpack.c.h.b16 %v2148
        %v2325 = vunpack.c.l.b16 %v2149
        %v2326 = vunpack.c.h.b16 %v2149
        %v2327 = vunpack.c.l.b16 %v2150
        %v2328 = vunpack.c.h.b16 %v2150
        %v2329 = vunpack.c.l.b16 %v2151
        %v2330 = vunpack.c.h.b16 %v2151
        %v2331 = vunpack.c.l.b16 %v2152
        %v2332 = vunpack.c.h.b16 %v2152
        %v2333 = vunpack.c.l.b16 %v2153
        %v2334 = vunpack.c.h.b16 %v2153
        %v2335 = vunpack.c.l.b16 %v2154
        %v2336 = vunpack.c.h.b16 %v2154
        %v2337 = vunpack.c.l.b16 %v2155
        %v2338 = vunpack.c.h.b16 %v2155
        %v2339 = vunpack.c.l.b16 %v2156
        %v2340 = vunpack.c.h.b16 %v2156
        %v2341 = vunpack.c.l.b16 %v2157
        %v2342 = vunpack.c.h.b16 %v2157
        %v2343 = vunpack.c.l.b16 %v2158
        %v2344 = vunpack.c.h.b16 %v2158
        %v2345 = vunpack.c.l.b16 %v2159
        %v2346 = vunpack.c.h.b16 %v2159
        %v2347 = vunpack.c.l.b16 %v2160
        %v2348 = vunpack.c.h.b16 %v2160
        %v2349 = vpack.c.b16 %v2287, %v2285
        %v2350 = vpack.c.b16 %v2288, %v2286
        %v2351 = vpack.c.b16 %v2291, %v2289
        %v2352 = vpack.c.b16 %v2292, %v2290
        %v2353 = vpack.c.b16 %v2295, %v2293
        %v2354 = vpack.c.b16 %v2296, %v2294
        %v2355 = vpack.c.b16 %v2299, %v2297
        %v2356 = vpack.c.b16 %v2300, %v2298
        %v2357 = vpack.c.b16 %v2303, %v2301
        %v2358 = vpack.c.b16 %v2304, %v2302
        %v2359 = vpack.c.b16 %v2307, %v2305
        %v2360 = vpack.c.b16 %v2308, %v2306
        %v2361 = vpack.c.b16 %v2311, %v2309
        %v2362 = vpack.c.b16 %v2312, %v2310
        %v2363 = vpack.c.b16 %v2315, %v2313
        %v2364 = vpack.c.b16 %v2316, %v2314
        %v2365 = vpack.c.b16 %v2319, %v2317
        %v2366 = vpack.c.b16 %v2320, %v2318
        %v2367 = vpack.c.b16 %v2323, %v2321
        %v2368 = vpack.c.b16 %v2324, %v2322
        %v2369 = vpack.c.b16 %v2327, %v2325
        %v2370 = vpack.c.b16 %v2328, %v2326
        %v2371 = vpack.c.b16 %v2331, %v2329
        %v2372 = vpack.c.b16 %v2332, %v2330
        %v2373 = vpack.c.b16 %v2335, %v2333
        %v2374 = vpack.c.b16 %v2336, %v2334
        %v2375 = vpack.c.b16 %v2339, %v2337
        %v2376 = vpack.c.b16 %v2340, %v2338
        %v2377 = vpack.c.b16 %v2343, %v2341
        %v2378 = vpack.c.b16 %v2344, %v2342
        %v2379 = vpack.c.b16 %v2347, %v2345
        %v2380 = vpack.c.b16 %v2348, %v2346
        %2413 = vmatprep.subr.bf16.mxu0 %v2364
        %2414 = vmatpush1.bf16.msra.mxu0 %v2363
        %2415 = vmatprep.subr.bf16.mxu0 %v2362
        %2416 = vmatpush1.bf16.msra.mxu0 %v2361
        %2417 = vmatprep.subr.bf16.mxu0 %v2360
        %2418 = vmatpush1.bf16.msra.mxu0 %v2359
        %2419 = vmatprep.subr.bf16.mxu0 %v2358
        %2420 = vmatpush1.bf16.msra.mxu0 %v2357
        %2421 = vmatprep.subr.bf16.mxu0 %v2356
        %2422 = vmatpush1.bf16.msra.mxu0 %v2355
        %2423 = vmatprep.subr.bf16.mxu0 %v2354
        %2424 = vmatpush1.bf16.msra.mxu0 %v2353
        %2425 = vmatprep.subr.bf16.mxu0 %v2352
        %2426 = vmatpush1.bf16.msra.mxu0 %v2351
        %2427 = vmatprep.subr.bf16.mxu0 %v2350
        %2428 = vmatpush1.bf16.msra.mxu0 %v2349
        %2429 = vmatprep.subr.bf16.mxu0 %v2380
        %2430 = vmatpush2.bf16.msra.mxu0 %v2379
        %2431 = vmatprep.subr.bf16.mxu0 %v2378
        %2432 = vmatpush2.bf16.msra.mxu0 %v2377
        %2433 = vmatprep.subr.bf16.mxu0 %v2376
        %2434 = vmatpush2.bf16.msra.mxu0 %v2375
        %2435 = vmatprep.subr.bf16.mxu0 %v2374
        %2436 = vmatpush2.bf16.msra.mxu0 %v2373
        %2437 = vmatprep.subr.bf16.mxu0 %v2372
        %2438 = vmatpush2.bf16.msra.mxu0 %v2371
        %2439 = vmatprep.subr.bf16.mxu0 %v2370
        %2440 = vmatpush2.bf16.msra.mxu0 %v2369
        %2441 = vmatprep.subr.bf16.mxu0 %v2368
        %2442 = vmatpush2.bf16.msra.mxu0 %v2367
        %2443 = vmatprep.subr.bf16.mxu0 %v2366
        %2444 = vmatpush2.bf16.msra.mxu0 %v2365
        %2445 = vmatprep.mubr.bf16.mxu0 %v2222
        %2446 = vmatmul.mubr.bf16.gmra.mxu0 %v2221
        %v2447 = vpop.f32.mrf.mxu0
        %v2448 = vadd.f32 %v2166, %v2447
        %v2449 = vpop.f32.mrf.mxu0
        %v2450 = vadd.f32 %v2170, %v2449
        %v2451 = vpop.f32.mrf.mxu0
        %v2452 = vadd.f32 %v2166, %v2451
        %v2453 = vpop.f32.mrf.mxu0
        %v2454 = vadd.f32 %v2170, %v2453
        %2455 = vmatprep.mubr.bf16.mxu0 %v2224
        %2456 = vmatmul.mubr.bf16.gmra.mxu0 %v2223
        %v2457 = vpop.f32.mrf.mxu0
        %v2458 = vadd.f32 %v2166, %v2457
        %v2459 = vpop.f32.mrf.mxu0
        %v2460 = vadd.f32 %v2170, %v2459
        %v2461 = vpop.f32.mrf.mxu0
        %v2462 = vadd.f32 %v2166, %v2461
        %v2463 = vpop.f32.mrf.mxu0
        %v2464 = vadd.f32 %v2170, %v2463
        %2465 = vmatprep.mubr.bf16.mxu0 %v2226
        %2466 = vmatmul.mubr.bf16.gmra.mxu0 %v2225
        %v2467 = vpop.f32.mrf.mxu0
        %v2468 = vadd.f32 %v2166, %v2467
        %v2469 = vpop.f32.mrf.mxu0
        %v2470 = vadd.f32 %v2170, %v2469
        %v2471 = vpop.f32.mrf.mxu0
        %v2472 = vadd.f32 %v2166, %v2471
        %v2473 = vpop.f32.mrf.mxu0
        %v2474 = vadd.f32 %v2170, %v2473
        %2475 = vmatprep.mubr.bf16.mxu0 %v2228
        %2476 = vmatmul.mubr.bf16.gmra.mxu0 %v2227
        %v2477 = vpop.f32.mrf.mxu0
        %v2478 = vadd.f32 %v2166, %v2477
        %v2479 = vpop.f32.mrf.mxu0
        %v2480 = vadd.f32 %v2170, %v2479
        %v2481 = vpop.f32.mrf.mxu0
        %v2482 = vadd.f32 %v2166, %v2481
        %v2483 = vpop.f32.mrf.mxu0
        %v2484 = vadd.f32 %v2170, %v2483
        %2485 = vmatprep.mubr.bf16.mxu0 %v2230
        %2486 = vmatmul.mubr.bf16.gmra.mxu0 %v2229
        %v2487 = vpop.f32.mrf.mxu0
        %v2488 = vadd.f32 %v2166, %v2487
        %v2489 = vpop.f32.mrf.mxu0
        %v2490 = vadd.f32 %v2170, %v2489
        %v2491 = vpop.f32.mrf.mxu0
        %v2492 = vadd.f32 %v2166, %v2491
        %v2493 = vpop.f32.mrf.mxu0
        %v2494 = vadd.f32 %v2170, %v2493
        %2495 = vmatprep.mubr.bf16.mxu0 %v2232
        %2496 = vmatmul.mubr.bf16.gmra.mxu0 %v2231
        %v2497 = vpop.f32.mrf.mxu0
        %v2498 = vadd.f32 %v2166, %v2497
        %v2499 = vpop.f32.mrf.mxu0
        %v2500 = vadd.f32 %v2170, %v2499
        %v2501 = vpop.f32.mrf.mxu0
        %v2502 = vadd.f32 %v2166, %v2501
        %v2503 = vpop.f32.mrf.mxu0
        %v2504 = vadd.f32 %v2170, %v2503
        %2505 = vmatprep.mubr.bf16.mxu0 %v2234
        %2506 = vmatmul.mubr.bf16.gmra.mxu0 %v2233
        %v2507 = vpop.f32.mrf.mxu0
        %v2508 = vadd.f32 %v2166, %v2507
        %v2509 = vpop.f32.mrf.mxu0
        %v2510 = vadd.f32 %v2170, %v2509
        %v2511 = vpop.f32.mrf.mxu0
        %v2512 = vadd.f32 %v2166, %v2511
        %v2513 = vpop.f32.mrf.mxu0
        %v2514 = vadd.f32 %v2170, %v2513
        %2515 = vmatprep.mubr.bf16.mxu0 %v2236
        %2516 = vmatmul.mubr.bf16.gmra.mxu0 %v2235
        %v2517 = vpop.f32.mrf.mxu0
        %v2518 = vadd.f32 %v2166, %v2517
        %v2519 = vpop.f32.mrf.mxu0
        %v2520 = vadd.f32 %v2170, %v2519
        %v2521 = vpop.f32.mrf.mxu0
        %v2522 = vadd.f32 %v2166, %v2521
        %v2523 = vpop.f32.mrf.mxu0
        %v2524 = vadd.f32 %v2170, %v2523
        %2525 = vdwg.mxu0
        %2526 = vst [vmem:[%s532] sm:$0xff] %v2448
        %2527 = vst [vmem:[%s532 + $0x8] sm:$0xff] %v2450
        %2528 = vst [vmem:[%s532 + $0x10] sm:$0xff] %v2452
        %2529 = vst [vmem:[%s532 + $0x18] sm:$0xff] %v2454
        %2530 = vst [vmem:[%s532 + $0x20] sm:$0xff] %v2458
        %2531 = vst [vmem:[%s532 + $0x28] sm:$0xff] %v2460
        %2532 = vst [vmem:[%s532 + $0x30] sm:$0xff] %v2462
        %2533 = vst [vmem:[%s532 + $0x38] sm:$0xff] %v2464
        %2534 = vst [vmem:[%s532 + $0x40] sm:$0xff] %v2468
        %2535 = vst [vmem:[%s532 + $0x48] sm:$0xff] %v2470
        %2536 = vst [vmem:[%s532 + $0x50] sm:$0xff] %v2472
        %2537 = vst [vmem:[%s532 + $0x58] sm:$0xff] %v2474
        %2538 = vst [vmem:[%s532 + $0x60] sm:$0xff] %v2478
        %2539 = vst [vmem:[%s532 + $0x68] sm:$0xff] %v2480
        %2540 = vst [vmem:[%s532 + $0x70] sm:$0xff] %v2482
        %2541 = vst [vmem:[%s532 + $0x78] sm:$0xff] %v2484
        %2542 = vst [vmem:[%s532 + $0x80] sm:$0xff] %v2488
        %2543 = vst [vmem:[%s532 + $0x88] sm:$0xff] %v2490
        %2544 = vst [vmem:[%s532 + $0x90] sm:$0xff] %v2492
        %2545 = vst [vmem:[%s532 + $0x98] sm:$0xff] %v2494
        %2546 = vst [vmem:[%s532 + $0xa0] sm:$0xff] %v2498
        %2547 = vst [vmem:[%s532 + $0xa8] sm:$0xff] %v2500
        %2548 = vst [vmem:[%s532 + $0xb0] sm:$0xff] %v2502
        %2549 = vst [vmem:[%s532 + $0xb8] sm:$0xff] %v2504
        %2550 = vst [vmem:[%s532 + $0xc0] sm:$0xff] %v2508
        %2551 = vst [vmem:[%s532 + $0xc8] sm:$0xff] %v2510
        %2552 = vst [vmem:[%s532 + $0xd0] sm:$0xff] %v2512
        %2553 = vst [vmem:[%s532 + $0xd8] sm:$0xff] %v2514
        %2554 = vst [vmem:[%s532 + $0xe0] sm:$0xff] %v2518
        %2555 = vst [vmem:[%s532 + $0xe8] sm:$0xff] %v2520
        %2556 = vst [vmem:[%s532 + $0xf0] sm:$0xff] %v2522
        %2557 = vst [vmem:[%s532 + $0xf8] sm:$0xff] %v2524
        %s2558 = sand.u32 %s246, 1
        %s2559 = sand.u32 %s246, 1
        %s2560 = smul.addr %s2559, 256
        %s2561 = scalar_lea.vmem [#allocation4], %s2560
        // Predicated region
        $region99: #{mlp_forward.1} parent=89 // pred_check
          %p2562 = pneg %p256
        $region100: #{mlp_forward.1} parent=89 // pred_check_branch
          %2564 = sbr.rel (%p2562) target = $region102
        $region101: #{mlp_forward.1} parent=89 // pred_region
          %s2565 = smul.u32 16, %s24
          %s2566 = smul.u32 2, %s25
          %s2567 = smul.addr %s2565, 4
          %s2568 = sadd.s32 %s2566, %s2567
          %s2569 = smul.addr %s2568, 8
          %s2570 = scalar_lea.vmem %s9, %s2569
          // Predicated region
          $region103: #{mlp_forward.1} parent=101 // pred_check
            _
          $region104: #{mlp_forward.1} parent=101 // pred_check_branch
            %2572 = sbr.rel (0) target = $region106
          $region105: #{mlp_forward.1} parent=101 // pred_region
            // Predicated region
            $region107: #{mlp_forward.1} parent=105 // pred_check
              _
            $region108: #{mlp_forward.1} parent=105 // pred_check_branch
              %2574 = sbr.rel (0) target = $region110
            $region109: #{mlp_forward.1} parent=105 // pred_region
              loop: start=0, step=1, limit=1
              $region111: #{mlp_forward.1} parent=109 // loop_pre_header
                _
              $region112: #{mlp_forward.1} parent=109 // loop_header
                %s2576 = sphi 0, %s2580
                %p2577 = scmp.ge.s32.totalorder %s2576, 1
                %s2581 = sphi %s2561, %s2561
                %s2582 = sphi %s2570, %s2570
              $region113: #{mlp_forward.1} parent=109 // loop_header_branch
                %2579 = sbr.rel (%p2577) target = $region117
              $region114: #{mlp_forward.1} parent=109 // loop_body
                %v2583 = vld [vmem:[%s2581] sm:$0xff]
                %2584 = vst [vmem:[%s2582] sm:$0xff] %v2583
                %v2585 = vld [vmem:[%s2581 + $0x8] sm:$0xff]
                %2586 = vst [vmem:[%s2582 + $0x8] sm:$0xff] %v2585
                %v2587 = vld [vmem:[%s2581 + $0x10] sm:$0xff]
                %2588 = vst [vmem:[%s2582 + $0x20] sm:$0xff] %v2587
                %v2589 = vld [vmem:[%s2581 + $0x18] sm:$0xff]
                %2590 = vst [vmem:[%s2582 + $0x28] sm:$0xff] %v2589
                %v2591 = vld [vmem:[%s2581 + $0x20] sm:$0xff]
                %2592 = vst [vmem:[%s2582 + $0x40] sm:$0xff] %v2591
                %v2593 = vld [vmem:[%s2581 + $0x28] sm:$0xff]
                %2594 = vst [vmem:[%s2582 + $0x48] sm:$0xff] %v2593
                %v2595 = vld [vmem:[%s2581 + $0x30] sm:$0xff]
                %2596 = vst [vmem:[%s2582 + $0x60] sm:$0xff] %v2595
                %v2597 = vld [vmem:[%s2581 + $0x38] sm:$0xff]
                %2598 = vst [vmem:[%s2582 + $0x68] sm:$0xff] %v2597
                %v2599 = vld [vmem:[%s2581 + $0x40] sm:$0xff]
                %2600 = vst [vmem:[%s2582 + $0x80] sm:$0xff] %v2599
                %v2601 = vld [vmem:[%s2581 + $0x48] sm:$0xff]
                %2602 = vst [vmem:[%s2582 + $0x88] sm:$0xff] %v2601
                %v2603 = vld [vmem:[%s2581 + $0x50] sm:$0xff]
                %2604 = vst [vmem:[%s2582 + $0xa0] sm:$0xff] %v2603
                %v2605 = vld [vmem:[%s2581 + $0x58] sm:$0xff]
                %2606 = vst [vmem:[%s2582 + $0xa8] sm:$0xff] %v2605
                %v2607 = vld [vmem:[%s2581 + $0x60] sm:$0xff]
                %2608 = vst [vmem:[%s2582 + $0xc0] sm:$0xff] %v2607
                %v2609 = vld [vmem:[%s2581 + $0x68] sm:$0xff]
                %2610 = vst [vmem:[%s2582 + $0xc8] sm:$0xff] %v2609
                %v2611 = vld [vmem:[%s2581 + $0x70] sm:$0xff]
                %2612 = vst [vmem:[%s2582 + $0xe0] sm:$0xff] %v2611
                %v2613 = vld [vmem:[%s2581 + $0x78] sm:$0xff]
                %2614 = vst [vmem:[%s2582 + $0xe8] sm:$0xff] %v2613
                %v2615 = vld [vmem:[%s2581 + $0x80] sm:$0xff]
                %2616 = vst [vmem:[%s2582 + $0x100] sm:$0xff] %v2615
                %v2617 = vld [vmem:[%s2581 + $0x88] sm:$0xff]
                %2618 = vst [vmem:[%s2582 + $0x108] sm:$0xff] %v2617
                %v2619 = vld [vmem:[%s2581 + $0x90] sm:$0xff]
                %2620 = vst [vmem:[%s2582 + $0x120] sm:$0xff] %v2619
                %v2621 = vld [vmem:[%s2581 + $0x98] sm:$0xff]
                %2622 = vst [vmem:[%s2582 + $0x128] sm:$0xff] %v2621
                %v2623 = vld [vmem:[%s2581 + $0xa0] sm:$0xff]
                %2624 = vst [vmem:[%s2582 + $0x140] sm:$0xff] %v2623
                %v2625 = vld [vmem:[%s2581 + $0xa8] sm:$0xff]
                %2626 = vst [vmem:[%s2582 + $0x148] sm:$0xff] %v2625
                %v2627 = vld [vmem:[%s2581 + $0xb0] sm:$0xff]
                %2628 = vst [vmem:[%s2582 + $0x160] sm:$0xff] %v2627
                %v2629 = vld [vmem:[%s2581 + $0xb8] sm:$0xff]
                %2630 = vst [vmem:[%s2582 + $0x168] sm:$0xff] %v2629
                %v2631 = vld [vmem:[%s2581 + $0xc0] sm:$0xff]
                %2632 = vst [vmem:[%s2582 + $0x180] sm:$0xff] %v2631
                %v2633 = vld [vmem:[%s2581 + $0xc8] sm:$0xff]
                %2634 = vst [vmem:[%s2582 + $0x188] sm:$0xff] %v2633
                %v2635 = vld [vmem:[%s2581 + $0xd0] sm:$0xff]
                %2636 = vst [vmem:[%s2582 + $0x1a0] sm:$0xff] %v2635
                %v2637 = vld [vmem:[%s2581 + $0xd8] sm:$0xff]
                %2638 = vst [vmem:[%s2582 + $0x1a8] sm:$0xff] %v2637
                %v2639 = vld [vmem:[%s2581 + $0xe0] sm:$0xff]
                %2640 = vst [vmem:[%s2582 + $0x1c0] sm:$0xff] %v2639
                %v2641 = vld [vmem:[%s2581 + $0xe8] sm:$0xff]
                %2642 = vst [vmem:[%s2582 + $0x1c8] sm:$0xff] %v2641
                %v2643 = vld [vmem:[%s2581 + $0xf0] sm:$0xff]
                %2644 = vst [vmem:[%s2582 + $0x1e0] sm:$0xff] %v2643
                %v2645 = vld [vmem:[%s2581 + $0xf8] sm:$0xff]
                %2646 = vst [vmem:[%s2582 + $0x1e8] sm:$0xff] %v2645
              $region115: #{mlp_forward.1} parent=109 // loop_footer
                %s2580 = sadd.s32 1, %s2576
              $region116: #{mlp_forward.1} parent=109 // loop_footer_branch
                %2575 = sbr.rel target = $region112
              $region117: #{mlp_forward.1} parent=109 // loop_exit
                _
            $region110: #{mlp_forward.1} parent=105 // pred_fallthru
              _
            // Predicated region
            $region118: #{mlp_forward.1} parent=105 // pred_check
              _
            $region119: #{mlp_forward.1} parent=105 // pred_check_branch
              %2648 = sbr.rel target = $region121
            $region120: #{mlp_forward.1} parent=105 // pred_region
              _
            $region121: #{mlp_forward.1} parent=105 // pred_fallthru
              _
          $region106: #{mlp_forward.1} parent=101 // pred_fallthru
            _
          %2649 = vnop
        $region102: #{mlp_forward.1} parent=89 // pred_fallthru
          _
      $region90: #{mlp_forward.1} parent=5 // pred_fallthru
        _
      %p2650 = scmp.le.s32.totalorder 2, %s15
      // Predicated region
      $region122: #{mlp_forward.1} parent=5 // pred_check
        %p2651 = pneg %p2650
      $region123: #{mlp_forward.1} parent=5 // pred_check_branch
        %2653 = sbr.rel (%p2651) target = $region125
      $region124: #{mlp_forward.1} parent=5 // pred_region
        %s2654 = ssub.s32 %s15, 2
        // Predicated region
        $region126: #{mlp_forward.1} parent=124 // pred_check
          %p2655 = pneg %p262
        $region127: #{mlp_forward.1} parent=124 // pred_check_branch
          %2657 = sbr.rel (%p2655) target = $region129
        $region128: #{mlp_forward.1} parent=124 // pred_region
          %s2658 = sand.u32 %s247, 1
          %s2659 = sand.u32 %s247, 1
          %s2660 = smul.addr %s2659, 256
          %s2661 = scalar_lea.vmem [#allocation4], %s2660
        $region129: #{mlp_forward.1} parent=124 // pred_fallthru
          _
      $region125: #{mlp_forward.1} parent=5 // pred_fallthru
        _
    $region6: #{mlp_forward.1} parent=1 // loop_footer
      %s19 = sadd.s32 1, %s15
    $region7: #{mlp_forward.1} parent=1 // loop_footer_branch
      %14 = sbr.rel target = $region3
    $region8: #{mlp_forward.1} parent=1 // loop_exit
      _

</llo_original>
